<compile_context>
chip_gen: v6e
topology: v6e:2x2x1
jax: 0.10.0
libtpu: 0.0.40
codegen_flags: <defaults>
</compile_context>

<pallas_src>
import functools

import jax
import jax.numpy as jnp
from jax import lax
from jax.experimental import pallas as pl
from jax.experimental.pallas import tpu as pltpu


_UNROLL_MAX_LAYERS = 4            # Python-unroll hidden layers up to this depth.
_SINGLE_BUFFER_WEIGHTS_OK = None  # cache: does pl.Buffered(1) lower on this jax/TPU?


def _round_up(n, m):
    return ((n + m - 1) // m) * m


def _vmem_capacity_bytes():
    """Per-core VMEM capacity; conservative 64 MiB (v7x) fallback."""
    try:
        info = pltpu.get_tpu_info()
        cap = getattr(info, "vmem_capacity_bytes", None)
        if cap:
            return int(cap)
    except Exception:
        pass
    return 64 * 2**20


def _mlp_kernel(x_ref, w_in_ref, b_in_ref, *rest, num_layers, compute_dtype):
    """One batch tile of the MLP; hidden state kept feature-major.

    x_ref:     [TILE_B, D]  (caller dtype; cast to compute_dtype in-kernel)
    w_in_ref:  [H, D]  compute_dtype     b_in_ref:  [H, 1] f32
    w_hid_ref: [L, H, H] compute_dtype   b_hid_ref: [L, H, 1] f32   (only if L > 0)
    w_out_ref: [H, 1] f32                b_out_ref: [1] f32 (SMEM)
    o_ref:     [1, TILE_B] f32  (lane-dense output slab)
    """
    if num_layers > 0:
        w_hid_ref, b_hid_ref, w_out_ref, b_out_ref, o_ref = rest
    else:
        w_hid_ref = b_hid_ref = None
        w_out_ref, b_out_ref, o_ref = rest

    # Layer 0: Linear(input_dim -> hidden) + ReLU.  Contract D directly against
    # the batch-major x tile (no transposed copy of x).  h: [H, TILE_B] f32.
    x = x_ref[...].astype(compute_dtype)
    h = lax.dot_general(w_in_ref[...], x,
                        dimension_numbers=(((1,), (1,)), ((), ())),
                        preferred_element_type=jnp.float32)
    h = jnp.maximum(h + b_in_ref[...], 0.0)

    def hidden_layer(w_l, b_l, h):
        hh = jnp.dot(w_l, h.astype(w_l.dtype), preferred_element_type=jnp.float32)
        return jnp.maximum(hh + b_l, 0.0)

    if num_layers > 0:
        if num_layers <= _UNROLL_MAX_LAYERS:
            for l in range(num_layers):                      # static unroll (small L)
                h = hidden_layer(w_hid_ref[l], b_hid_ref[l], h)
        else:                                                # bound live ranges (big L)
            h = lax.fori_loop(
                0, num_layers,
                lambda l, h: hidden_layer(w_hid_ref[l], b_hid_ref[l], h),
                h)

    # Output Linear(hidden -> 1): VPU multiply + sublane reduce into a lane-dense
    # [1, TILE_B] row (free filler when the hidden matmuls bind the MXU).
    out = jnp.sum(h * w_out_ref[...], axis=0, keepdims=True) + b_out_ref[0]
    o_ref[...] = out.astype(o_ref.dtype)


def seed_net_forward(x, params, *, num_layers, tile_b=None,
                     compute_dtype=jnp.bfloat16):
    """SeedNet forward pass with a Pallas TPU kernel.

    x: [B, input_dim]  (any float dtype; consumed batch-major, as-is)
    params (torch nn.Linear layout, [out_features, in_features]):
        w_in [H, D], b_in [H, 1], w_hid [L, H, H], b_hid [L, H, 1],
        w_out [H, 1], b_out [1]
    returns: [B] float32  (matches torch's .view(-1))
    """
    global _SINGLE_BUFFER_WEIGHTS_OK

    B, D = x.shape
    H = params["w_in"].shape[0]
    L = int(num_layers)
    cd = jnp.dtype(compute_dtype)
    x_itemsize = jnp.dtype(x.dtype).itemsize

    # ---- weights: matmul weights in the compute dtype, biases stay f32 ----
    w_in = params["w_in"].astype(cd)                           # [H, D]
    b_in = params["b_in"].astype(jnp.float32)                  # [H, 1]
    w_out = params["w_out"].astype(jnp.float32)                # [H, 1]
    b_out = params["b_out"].reshape(1).astype(jnp.float32)     # [1] -> SMEM
    if L > 0:
        w_hid = params["w_hid"].astype(cd)                     # [L, H, H]
        b_hid = params["b_hid"].astype(jnp.float32)            # [L, H, 1]

    weight_bytes = H * D * cd.itemsize + H * 4 + H * 4 + 4
    if L > 0:
        weight_bytes += L * H * H * cd.itemsize + L * H * 4
    # TODO(synk): if weight_bytes exceeds ~25 MiB (v7x) / ~50 MiB (v5e/v6e),
    # switch w_hid to per-layer HBM streaming instead of full VMEM residency.

    # ---- batch tile size & VMEM budgeting (generation-aware) ----
    cap = _vmem_capacity_bytes()

    def tile_bytes(tb):
        # double-buffered streamed x/out tiles + ~3 live f32 [H, tb] activations
        return 2 * tb * D * x_itemsize + 2 * tb * 4 + 3 * H * tb * 4

    if tile_b is None:
        budget = max(2 * 2**20, int(0.7 * cap) - 2 * weight_bytes)
        tb = 2048                                   # big tiles amortize per-step cost
        while tb > 256 and tile_bytes(tb) > budget:
            tb -= 256                               # 256-multiples keep v6e MXU full
        if B > 256:                                 # >= 2 tiles: feed v7x's 2nd core
            tb = min(tb, _round_up(pl.cdiv(B, 2), 256))
        tile_b = max(128, min(tb, _round_up(B, 128)))
    else:
        tile_b = max(128, (int(tile_b) // 128) * 128)
        tile_b = min(tile_b, _round_up(B, 128))

    num_tiles = pl.cdiv(B, tile_b)                  # tail block is masked, not padded

    def vmem_limit(weight_buffers):
        need = weight_buffers * weight_bytes + tile_bytes(tile_b) + (2 << 20)
        hard_cap = min(int(0.8 * cap), 100 * 2**20)   # never exceed physical VMEM
        return int(min(max(need, 32 * 2**20), hard_cap))

    kernel = functools.partial(_mlp_kernel, num_layers=L, compute_dtype=cd)

    def build_and_call(single_buffer_weights):
        def const_spec(shape):
            idx = lambda i: (0,) * len(shape)        # noqa: E731 (constant block)
            if single_buffer_weights:
                return pl.BlockSpec(shape, idx, pipeline_mode=pl.Buffered(1))
            return pl.BlockSpec(shape, idx)

        args = [x, w_in, b_in]
        in_specs = [
            pl.BlockSpec((tile_b, D), lambda i: (i, 0)),   # x: streamed per tile
            const_spec((H, D)),                            # weights: VMEM-resident
            const_spec((H, 1)),
        ]
        if L > 0:
            args += [w_hid, b_hid]
            in_specs += [const_spec((L, H, H)), const_spec((L, H, 1))]
        args += [w_out, b_out]
        in_specs += [
            const_spec((H, 1)),
            pl.BlockSpec(memory_space=pltpu.MemorySpace.SMEM),   # scalar out-bias
        ]

        return pl.pallas_call(
            kernel,
            out_shape=jax.ShapeDtypeStruct((1, B), jnp.float32),
            grid_spec=pltpu.PrefetchScalarGridSpec(
                num_scalar_prefetch=0,
                grid=(num_tiles,),
                in_specs=in_specs,
                out_specs=pl.BlockSpec((1, tile_b), lambda i: (0, i)),
            ),
            compiler_params=pltpu.CompilerParams(
                dimension_semantics=("parallel",),
                vmem_limit_bytes=vmem_limit(1 if single_buffer_weights else 2),
            ),
        )(*args)

    # Try single-buffered resident weights first (halves their VMEM footprint);
    # fall back to default double-buffering if this jax/Mosaic rejects it.
    if _SINGLE_BUFFER_WEIGHTS_OK is None:
        try:
            out = jax.block_until_ready(build_and_call(True))
            _SINGLE_BUFFER_WEIGHTS_OK = True
        except Exception:
            _SINGLE_BUFFER_WEIGHTS_OK = False
            out = build_and_call(False)
    else:
        out = build_and_call(_SINGLE_BUFFER_WEIGHTS_OK)

    return out.reshape(-1)


def init_params(key, input_dim, hidden_dim, num_layers):
    """Deterministic init mimicking nn.Linear's uniform(-1/sqrt(fan_in), 1/sqrt(fan_in)).

    Weights are stored in torch layout [out_features, in_features]; biases as columns.
    """
    ks = jax.random.split(key, 6)
    L = int(num_layers)

    def uni(k, shape, fan_in):
        bound = 1.0 / (float(fan_in) ** 0.5)
        return jax.random.uniform(k, shape, jnp.float32, -bound, bound)

    return {
        "w_in": uni(ks[0], (hidden_dim, input_dim), input_dim),
        "b_in": uni(ks[1], (hidden_dim, 1), input_dim),
        "w_hid": uni(ks[2], (L, hidden_dim, hidden_dim), hidden_dim),
        "b_hid": uni(ks[3], (L, hidden_dim, 1), hidden_dim),
        "w_out": uni(ks[4], (hidden_dim, 1), hidden_dim),
        "b_out": uni(ks[5], (1,), hidden_dim),
    }


def seed_net_ref(x, params, *, num_layers, compute_dtype=jnp.float32):
    """Pure-JAX batch-major reference for correctness checking."""
    cd = jnp.dtype(compute_dtype)

    def dot(a, b):
        return jnp.dot(a.astype(cd), b.astype(cd), preferred_element_type=jnp.float32)

    h = jnp.maximum(dot(x, params["w_in"].T) + params["b_in"][:, 0][None, :], 0.0)
    for l in range(num_layers):
        h = jnp.maximum(dot(h, params["w_hid"][l].T)
                        + params["b_hid"][l, :, 0][None, :], 0.0)
    out = jnp.sum(h * params["w_out"][:, 0][None, :], axis=-1) + params["b_out"][0]
    return out


if __name__ == "__main__":
    # Small shapes consistent with the module: x is [batch, input_dim].
    batch, input_dim, hidden_dim, num_layers = 300, 8, 32, 2

    key = jax.random.PRNGKey(0)
    k_x, k_p = jax.random.split(key)
    x = jax.random.normal(k_x, (batch, input_dim), dtype=jnp.float32)
    params = init_params(k_p, input_dim, hidden_dim, num_layers)

    # Default path: bf16 MXU compute, auto tile_b (2 grid steps incl. masked tail).
    y = jax.block_until_ready(seed_net_forward(x, params, num_layers=num_layers))
    assert y.shape == (batch,)
    y_ref_bf16 = seed_net_ref(x, params, num_layers=num_layers,
                              compute_dtype=jnp.bfloat16)
    assert jnp.allclose(y, y_ref_bf16, atol=1e-2, rtol=1e-2)

    # f32 path with an explicit small tile (3 grid steps incl. a masked tail).
    y32 = jax.block_until_ready(
        seed_net_forward(x, params, num_layers=num_layers, tile_b=128,
                         compute_dtype=jnp.float32))
    assert jnp.allclose(y32, seed_net_ref(x, params, num_layers=num_layers),
                        atol=1e-4, rtol=1e-4)

    # num_layers == 0: hidden-weight operands are dropped entirely (no dummy DMA).
    params0 = init_params(k_p, input_dim, hidden_dim, 0)
    y0 = jax.block_until_ready(
        seed_net_forward(x, params0, num_layers=0, compute_dtype=jnp.float32))
    assert jnp.allclose(y0, seed_net_ref(x, params0, num_layers=0),
                        atol=1e-4, rtol=1e-4)

    # num_layers > _UNROLL_MAX_LAYERS: exercises the lax.fori_loop hidden path.
    deep_layers = _UNROLL_MAX_LAYERS + 2
    params_deep = init_params(k_p, input_dim, hidden_dim, deep_layers)
    y_deep = jax.block_until_ready(
        seed_net_forward(x, params_deep, num_layers=deep_layers,
                         compute_dtype=jnp.float32))
    assert jnp.allclose(y_deep,
                        seed_net_ref(x, params_deep, num_layers=deep_layers),
                        atol=1e-3, rtol=1e-3)

    print("KERNEL_OK")
</pallas_src>

<mosaic_0001>
module attributes {stable_mosaic.version = 11 : i64} {
  func.func @_mlp_kernel(%arg0: i32, %arg1: memref<256x8xf32, #tpu.memory_space<vmem>>, %arg2: memref<32x8xbf16, #tpu.memory_space<vmem>>, %arg3: memref<32x1xf32, #tpu.memory_space<vmem>>, %arg4: memref<2x32x32xbf16, #tpu.memory_space<vmem>>, %arg5: memref<2x32x1xf32, #tpu.memory_space<vmem>>, %arg6: memref<32x1xf32, #tpu.memory_space<vmem>>, %arg7: memref<1xf32, #tpu.memory_space<smem>>, %arg8: memref<1x256xf32, #tpu.memory_space<vmem>>) attributes {dimension_semantics = [#tpu.dimension_semantics<parallel>], iteration_bounds = array<i64: 2>, scalar_prefetch = 0 : i64, scratch_operands = 0 : i64, tpu.core_type = #tpu.core_type<tc>, window_params = [{transform_indices = @transform_0, window_bounds = array<i64: 256, 8>}, {pipeline_mode = #tpu.pipeline_mode<synchronous>, transform_indices = @transform_1, window_bounds = array<i64: 32, 8>}, {pipeline_mode = #tpu.pipeline_mode<synchronous>, transform_indices = @transform_2, window_bounds = array<i64: 32, 1>}, {pipeline_mode = #tpu.pipeline_mode<synchronous>, transform_indices = @transform_3, window_bounds = array<i64: 2, 32, 32>}, {pipeline_mode = #tpu.pipeline_mode<synchronous>, transform_indices = @transform_4, window_bounds = array<i64: 2, 32, 1>}, {pipeline_mode = #tpu.pipeline_mode<synchronous>, transform_indices = @transform_5, window_bounds = array<i64: 32, 1>}, {transform_indices = @transform_6, window_bounds = array<i64: 1>}, {transform_indices = @transform_7, window_bounds = array<i64: 1, 256>}]} {
    %c0 = arith.constant 0 : index
    %c0_0 = arith.constant 0 : index
    %0 = vector.load %arg1[%c0, %c0_0] : memref<256x8xf32, #tpu.memory_space<vmem>>, vector<256x8xf32>
    %1 = arith.truncf %0 : vector<256x8xf32> to vector<256x8xbf16>
    %c0_1 = arith.constant 0 : index
    %c0_2 = arith.constant 0 : index
    %2 = vector.load %arg2[%c0_1, %c0_2] : memref<32x8xbf16, #tpu.memory_space<vmem>>, vector<32x8xbf16>
    %cst = arith.constant dense<0.000000e+00> : vector<32x256xf32>
    %3 = tpu.matmul %2, %1, %cst {dimension_numbers = #tpu.dot_dimension_numbers<[1], [1], [0], [0], [0, 0, 1, 0], [], []>} : vector<32x8xbf16>, vector<256x8xbf16>, vector<32x256xf32> -> vector<32x256xf32>
    %c0_3 = arith.constant 0 : index
    %c0_4 = arith.constant 0 : index
    %4 = vector.load %arg3[%c0_3, %c0_4] : memref<32x1xf32, #tpu.memory_space<vmem>>, vector<32x1xf32>
    %5 = vector.broadcast %4 : vector<32x1xf32> to vector<32x256xf32>
    %6 = arith.addf %3, %5 : vector<32x256xf32>
    %cst_5 = arith.constant 0.000000e+00 : f32
    %7 = vector.broadcast %cst_5 : f32 to vector<32x256xf32>
    %8 = arith.maximumf %6, %7 : vector<32x256xf32>
    %c0_6 = arith.constant 0 : index
    %c0_7 = arith.constant 0 : index
    %c0_8 = arith.constant 0 : index
    %9 = vector.load %arg4[%c0_6, %c0_7, %c0_8] : memref<2x32x32xbf16, #tpu.memory_space<vmem>>, vector<1x32x32xbf16>
    %10 = vector.shape_cast %9 : vector<1x32x32xbf16> to vector<32x32xbf16>
    %c0_9 = arith.constant 0 : index
    %c0_10 = arith.constant 0 : index
    %c0_11 = arith.constant 0 : index
    %11 = vector.load %arg5[%c0_9, %c0_10, %c0_11] : memref<2x32x1xf32, #tpu.memory_space<vmem>>, vector<1x32x1xf32>
    %12 = vector.shape_cast %11 : vector<1x32x1xf32> to vector<32x1xf32>
    %13 = arith.truncf %8 : vector<32x256xf32> to vector<32x256xbf16>
    %cst_12 = arith.constant dense<0.000000e+00> : vector<32x256xf32>
    %14 = tpu.matmul %10, %13, %cst_12 {dimension_numbers = #tpu.dot_dimension_numbers<[1], [0], [0], [1], [0, 0, 1, 1], [], []>} : vector<32x32xbf16>, vector<32x256xbf16>, vector<32x256xf32> -> vector<32x256xf32>
    %15 = vector.broadcast %12 : vector<32x1xf32> to vector<32x256xf32>
    %16 = arith.addf %14, %15 : vector<32x256xf32>
    %cst_13 = arith.constant 0.000000e+00 : f32
    %17 = vector.broadcast %cst_13 : f32 to vector<32x256xf32>
    %18 = arith.maximumf %16, %17 : vector<32x256xf32>
    %c1 = arith.constant 1 : index
    %c0_14 = arith.constant 0 : index
    %c0_15 = arith.constant 0 : index
    %19 = vector.load %arg4[%c1, %c0_14, %c0_15] : memref<2x32x32xbf16, #tpu.memory_space<vmem>>, vector<1x32x32xbf16>
    %20 = vector.shape_cast %19 : vector<1x32x32xbf16> to vector<32x32xbf16>
    %c1_16 = arith.constant 1 : index
    %c0_17 = arith.constant 0 : index
    %c0_18 = arith.constant 0 : index
    %21 = vector.load %arg5[%c1_16, %c0_17, %c0_18] : memref<2x32x1xf32, #tpu.memory_space<vmem>>, vector<1x32x1xf32>
    %22 = vector.shape_cast %21 : vector<1x32x1xf32> to vector<32x1xf32>
    %23 = arith.truncf %18 : vector<32x256xf32> to vector<32x256xbf16>
    %cst_19 = arith.constant dense<0.000000e+00> : vector<32x256xf32>
    %24 = tpu.matmul %20, %23, %cst_19 {dimension_numbers = #tpu.dot_dimension_numbers<[1], [0], [0], [1], [0, 0, 1, 1], [], []>} : vector<32x32xbf16>, vector<32x256xbf16>, vector<32x256xf32> -> vector<32x256xf32>
    %25 = vector.broadcast %22 : vector<32x1xf32> to vector<32x256xf32>
    %26 = arith.addf %24, %25 : vector<32x256xf32>
    %cst_20 = arith.constant 0.000000e+00 : f32
    %27 = vector.broadcast %cst_20 : f32 to vector<32x256xf32>
    %28 = arith.maximumf %26, %27 : vector<32x256xf32>
    %c0_21 = arith.constant 0 : index
    %c0_22 = arith.constant 0 : index
    %29 = vector.load %arg6[%c0_21, %c0_22] : memref<32x1xf32, #tpu.memory_space<vmem>>, vector<32x1xf32>
    %30 = vector.broadcast %29 : vector<32x1xf32> to vector<32x256xf32>
    %31 = arith.mulf %28, %30 : vector<32x256xf32>
    %cst_23 = arith.constant dense<0.000000e+00> : vector<256xf32>
    %32 = vector.multi_reduction <add>, %31, %cst_23 [0] : vector<32x256xf32> to vector<256xf32>
    %33 = vector.shape_cast %32 : vector<256xf32> to vector<1x256xf32>
    %c0_24 = arith.constant 0 : index
    %34 = memref.load %arg7[%c0_24] : memref<1xf32, #tpu.memory_space<smem>>
    %35 = vector.broadcast %34 : f32 to vector<1x256xf32>
    %36 = arith.addf %33, %35 : vector<1x256xf32>
    %c0_25 = arith.constant 0 : index
    %c0_26 = arith.constant 0 : index
    %37 = vector.load %arg8[%c0_25, %c0_26] : memref<1x256xf32, #tpu.memory_space<vmem>>, vector<1x256xf32>
    tpu.vector_store %arg8[%c0_25, %c0_26], %36 {strides = array<i32>} : memref<1x256xf32, #tpu.memory_space<vmem>>, vector<1x256xf32>,
    return
  }
  func.func @transform_0(%arg0: i32) -> (i32, i32) {
    %c0_i32 = arith.constant 0 : i32
    %c0_i32_0 = arith.constant 0 : i32
    return %arg0, %c0_i32 : i32, i32
  }
  func.func @transform_1(%arg0: i32) -> (i32, i32) {
    %c0_i32 = arith.constant 0 : i32
    %c0_i32_0 = arith.constant 0 : i32
    %c0_i32_1 = arith.constant 0 : i32
    return %c0_i32, %c0_i32_0 : i32, i32
  }
  func.func @transform_2(%arg0: i32) -> (i32, i32) {
    %c0_i32 = arith.constant 0 : i32
    %c0_i32_0 = arith.constant 0 : i32
    %c0_i32_1 = arith.constant 0 : i32
    return %c0_i32, %c0_i32_0 : i32, i32
  }
  func.func @transform_3(%arg0: i32) -> (i32, i32, i32) {
    %c0_i32 = arith.constant 0 : i32
    %c0_i32_0 = arith.constant 0 : i32
    %c0_i32_1 = arith.constant 0 : i32
    %c0_i32_2 = arith.constant 0 : i32
    return %c0_i32, %c0_i32_0, %c0_i32_1 : i32, i32, i32
  }
  func.func @transform_4(%arg0: i32) -> (i32, i32, i32) {
    %c0_i32 = arith.constant 0 : i32
    %c0_i32_0 = arith.constant 0 : i32
    %c0_i32_1 = arith.constant 0 : i32
    %c0_i32_2 = arith.constant 0 : i32
    return %c0_i32, %c0_i32_0, %c0_i32_1 : i32, i32, i32
  }
  func.func @transform_5(%arg0: i32) -> (i32, i32) {
    %c0_i32 = arith.constant 0 : i32
    %c0_i32_0 = arith.constant 0 : i32
    %c0_i32_1 = arith.constant 0 : i32
    return %c0_i32, %c0_i32_0 : i32, i32
  }
  func.func @transform_6(%arg0: i32) -> i32 {
    %c0_i32 = arith.constant 0 : i32
    %c0_i32_0 = arith.constant 0 : i32
    return %c0_i32 : i32
  }
  func.func @transform_7(%arg0: i32) -> (i32, i32) {
    %c0_i32 = arith.constant 0 : i32
    %c0_i32_0 = arith.constant 0 : i32
    return %c0_i32, %arg0 : i32, i32
  }
}

module attributes {stable_mosaic.version = 11 : i64} {
  func.func @_mlp_kernel(%arg0: i32, %arg1: memref<256x8xf32, #tpu.memory_space<vmem>>, %arg2: memref<32x8xbf16, #tpu.memory_space<vmem>>, %arg3: memref<32x1xf32, #tpu.memory_space<vmem>>, %arg4: memref<2x32x32xbf16, #tpu.memory_space<vmem>>, %arg5: memref<2x32x1xf32, #tpu.memory_space<vmem>>, %arg6: memref<32x1xf32, #tpu.memory_space<vmem>>, %arg7: memref<1xf32, #tpu.memory_space<smem>>, %arg8: memref<1x256xf32, #tpu.memory_space<vmem>>) attributes {dimension_semantics = [#tpu.dimension_semantics<parallel>], iteration_bounds = array<i64: 2>, scalar_prefetch = 0 : i64, scratch_operands = 0 : i64, tpu.core_type = #tpu.core_type<tc>, window_params = [{transform_indices = @transform_0, window_bounds = array<i64: 256, 8>}, {pipeline_mode = #tpu.pipeline_mode<synchronous>, transform_indices = @transform_1, window_bounds = array<i64: 32, 8>}, {pipeline_mode = #tpu.pipeline_mode<synchronous>, transform_indices = @transform_2, window_bounds = array<i64: 32, 1>}, {pipeline_mode = #tpu.pipeline_mode<synchronous>, transform_indices = @transform_3, window_bounds = array<i64: 2, 32, 32>}, {pipeline_mode = #tpu.pipeline_mode<synchronous>, transform_indices = @transform_4, window_bounds = array<i64: 2, 32, 1>}, {pipeline_mode = #tpu.pipeline_mode<synchronous>, transform_indices = @transform_5, window_bounds = array<i64: 32, 1>}, {transform_indices = @transform_6, window_bounds = array<i64: 1>}, {transform_indices = @transform_7, window_bounds = array<i64: 1, 256>}]} {
    %c0 = arith.constant 0 : index
    %c0_0 = arith.constant 0 : index
    %0 = vector.load %arg1[%c0, %c0_0] : memref<256x8xf32, #tpu.memory_space<vmem>>, vector<256x8xf32>
    %1 = arith.truncf %0 : vector<256x8xf32> to vector<256x8xbf16>
    %c0_1 = arith.constant 0 : index
    %c0_2 = arith.constant 0 : index
    %2 = vector.load %arg2[%c0_1, %c0_2] : memref<32x8xbf16, #tpu.memory_space<vmem>>, vector<32x8xbf16>
    %cst = arith.constant dense<0.000000e+00> : vector<32x256xf32>
    %3 = tpu.matmul %2, %1, %cst {dimension_numbers = #tpu.dot_dimension_numbers<[1], [1], [0], [0], [0, 0, 1, 0], [], []>} : vector<32x8xbf16>, vector<256x8xbf16>, vector<32x256xf32> -> vector<32x256xf32>
    %c0_3 = arith.constant 0 : index
    %c0_4 = arith.constant 0 : index
    %4 = vector.load %arg3[%c0_3, %c0_4] : memref<32x1xf32, #tpu.memory_space<vmem>>, vector<32x1xf32>
    %5 = vector.broadcast %4 : vector<32x1xf32> to vector<32x256xf32>
    %6 = arith.addf %3, %5 : vector<32x256xf32>
    %cst_5 = arith.constant 0.000000e+00 : f32
    %7 = vector.broadcast %cst_5 : f32 to vector<32x256xf32>
    %8 = arith.maximumf %6, %7 : vector<32x256xf32>
    %c0_6 = arith.constant 0 : index
    %c0_7 = arith.constant 0 : index
    %c0_8 = arith.constant 0 : index
    %9 = vector.load %arg4[%c0_6, %c0_7, %c0_8] : memref<2x32x32xbf16, #tpu.memory_space<vmem>>, vector<1x32x32xbf16>
    %10 = vector.shape_cast %9 : vector<1x32x32xbf16> to vector<32x32xbf16>
    %c0_9 = arith.constant 0 : index
    %c0_10 = arith.constant 0 : index
    %c0_11 = arith.constant 0 : index
    %11 = vector.load %arg5[%c0_9, %c0_10, %c0_11] : memref<2x32x1xf32, #tpu.memory_space<vmem>>, vector<1x32x1xf32>
    %12 = vector.shape_cast %11 : vector<1x32x1xf32> to vector<32x1xf32>
    %13 = arith.truncf %8 : vector<32x256xf32> to vector<32x256xbf16>
    %cst_12 = arith.constant dense<0.000000e+00> : vector<32x256xf32>
    %14 = tpu.matmul %10, %13, %cst_12 {dimension_numbers = #tpu.dot_dimension_numbers<[1], [0], [0], [1], [0, 0, 1, 1], [], []>} : vector<32x32xbf16>, vector<32x256xbf16>, vector<32x256xf32> -> vector<32x256xf32>
    %15 = vector.broadcast %12 : vector<32x1xf32> to vector<32x256xf32>
    %16 = arith.addf %14, %15 : vector<32x256xf32>
    %cst_13 = arith.constant 0.000000e+00 : f32
    %17 = vector.broadcast %cst_13 : f32 to vector<32x256xf32>
    %18 = arith.maximumf %16, %17 : vector<32x256xf32>
    %c1 = arith.constant 1 : index
    %c0_14 = arith.constant 0 : index
    %c0_15 = arith.constant 0 : index
    %19 = vector.load %arg4[%c1, %c0_14, %c0_15] : memref<2x32x32xbf16, #tpu.memory_space<vmem>>, vector<1x32x32xbf16>
    %20 = vector.shape_cast %19 : vector<1x32x32xbf16> to vector<32x32xbf16>
    %c1_16 = arith.constant 1 : index
    %c0_17 = arith.constant 0 : index
    %c0_18 = arith.constant 0 : index
    %21 = vector.load %arg5[%c1_16, %c0_17, %c0_18] : memref<2x32x1xf32, #tpu.memory_space<vmem>>, vector<1x32x1xf32>
    %22 = vector.shape_cast %21 : vector<1x32x1xf32> to vector<32x1xf32>
    %23 = arith.truncf %18 : vector<32x256xf32> to vector<32x256xbf16>
    %cst_19 = arith.constant dense<0.000000e+00> : vector<32x256xf32>
    %24 = tpu.matmul %20, %23, %cst_19 {dimension_numbers = #tpu.dot_dimension_numbers<[1], [0], [0], [1], [0, 0, 1, 1], [], []>} : vector<32x32xbf16>, vector<32x256xbf16>, vector<32x256xf32> -> vector<32x256xf32>
    %25 = vector.broadcast %22 : vector<32x1xf32> to vector<32x256xf32>
    %26 = arith.addf %24, %25 : vector<32x256xf32>
    %cst_20 = arith.constant 0.000000e+00 : f32
    %27 = vector.broadcast %cst_20 : f32 to vector<32x256xf32>
    %28 = arith.maximumf %26, %27 : vector<32x256xf32>
    %c0_21 = arith.constant 0 : index
    %c0_22 = arith.constant 0 : index
    %29 = vector.load %arg6[%c0_21, %c0_22] : memref<32x1xf32, #tpu.memory_space<vmem>>, vector<32x1xf32>
    %30 = vector.broadcast %29 : vector<32x1xf32> to vector<32x256xf32>
    %31 = arith.mulf %28, %30 : vector<32x256xf32>
    %cst_23 = arith.constant dense<0.000000e+00> : vector<256xf32>
    %32 = vector.multi_reduction <add>, %31, %cst_23 [0] : vector<32x256xf32> to vector<256xf32>
    %33 = vector.shape_cast %32 : vector<256xf32> to vector<1x256xf32>
    %c0_24 = arith.constant 0 : index
    %34 = memref.load %arg7[%c0_24] : memref<1xf32, #tpu.memory_space<smem>>
    %35 = vector.broadcast %34 : f32 to vector<1x256xf32>
    %36 = arith.addf %33, %35 : vector<1x256xf32>
    %c0_25 = arith.constant 0 : index
    %c0_26 = arith.constant 0 : index
    %37 = vector.load %arg8[%c0_25, %c0_26] : memref<1x256xf32, #tpu.memory_space<vmem>>, vector<1x256xf32>
    tpu.vector_store %arg8[%c0_25, %c0_26], %36 {strides = array<i32>} : memref<1x256xf32, #tpu.memory_space<vmem>>, vector<1x256xf32>,
    return
  }
  func.func @transform_0(%arg0: i32) -> (i32, i32) {
    %c0_i32 = arith.constant 0 : i32
    %c0_i32_0 = arith.constant 0 : i32
    return %arg0, %c0_i32 : i32, i32
  }
  func.func @transform_1(%arg0: i32) -> (i32, i32) {
    %c0_i32 = arith.constant 0 : i32
    %c0_i32_0 = arith.constant 0 : i32
    %c0_i32_1 = arith.constant 0 : i32
    return %c0_i32, %c0_i32_0 : i32, i32
  }
  func.func @transform_2(%arg0: i32) -> (i32, i32) {
    %c0_i32 = arith.constant 0 : i32
    %c0_i32_0 = arith.constant 0 : i32
    %c0_i32_1 = arith.constant 0 : i32
    return %c0_i32, %c0_i32_0 : i32, i32
  }
  func.func @transform_3(%arg0: i32) -> (i32, i32, i32) {
    %c0_i32 = arith.constant 0 : i32
    %c0_i32_0 = arith.constant 0 : i32
    %c0_i32_1 = arith.constant 0 : i32
    %c0_i32_2 = arith.constant 0 : i32
    return %c0_i32, %c0_i32_0, %c0_i32_1 : i32, i32, i32
  }
  func.func @transform_4(%arg0: i32) -> (i32, i32, i32) {
    %c0_i32 = arith.constant 0 : i32
    %c0_i32_0 = arith.constant 0 : i32
    %c0_i32_1 = arith.constant 0 : i32
    %c0_i32_2 = arith.constant 0 : i32
    return %c0_i32, %c0_i32_0, %c0_i32_1 : i32, i32, i32
  }
  func.func @transform_5(%arg0: i32) -> (i32, i32) {
    %c0_i32 = arith.constant 0 : i32
    %c0_i32_0 = arith.constant 0 : i32
    %c0_i32_1 = arith.constant 0 : i32
    return %c0_i32, %c0_i32_0 : i32, i32
  }
  func.func @transform_6(%arg0: i32) -> i32 {
    %c0_i32 = arith.constant 0 : i32
    %c0_i32_0 = arith.constant 0 : i32
    return %c0_i32 : i32
  }
  func.func @transform_7(%arg0: i32) -> (i32, i32) {
    %c0_i32 = arith.constant 0 : i32
    %c0_i32_0 = arith.constant 0 : i32
    return %c0_i32, %arg0 : i32, i32
  }
}

</mosaic_0001>

<llo_original>
// kernel: tpu_custom_call.1
$region0: #{tpu_custom_call.1}
  #allocation0 [shape = 'u32[]', space=smem, size = 0x4, offset = 0x4, fixed_abs, tag = 'smem constant byte address 0x4 - core index']
  #allocation1 [shape = 'u32[144,128]{1,0:T(1,128)}', space=vmem, size = 0x12000, scoped, tag = 'internal scratch']
  #allocation2 [shape = 'f32[1]{0:T(128)S(6)}', space=smem, size = 0x200, scoped, tag = 'scoped memory for tpu_custom_call.1']
  %s0 = inlined_call_operand.vmem [shape: f32[300,8], index: 0, kind: input, shape index: {}]
  %s1 = inlined_call_operand.vmem [shape: bf16[32,8], index: 1, kind: input, shape index: {}]
  %s2 = inlined_call_operand.vmem [shape: f32[32,1], index: 2, kind: input, shape index: {}]
  %s3 = inlined_call_operand.vmem [shape: bf16[2,32,32], index: 3, kind: input, shape index: {}]
  %s4 = inlined_call_operand.vmem [shape: f32[2,32,1], index: 4, kind: input, shape index: {}]
  %s5 = inlined_call_operand.vmem [shape: f32[32,1], index: 5, kind: input, shape index: {}]
  %s6 = inlined_call_operand.<no memory space> [shape: f32[1], index: 6, kind: input, shape index: {}]
  %s7 = inlined_call_operand.hbm [shape: f32[1,300], index: 7, kind: output, shape index: {}]
  %s8 = sld [smem:[#allocation0]]
  $region61: #{tpu_custom_call.1} parent=0
    _
  %s10 = ssub.s32 1, %s8
  %s11 = scalar_select 0, %s10, %s8
  %12 = sst [smem:[#allocation2]] %s6
  $region1: #{tpu_custom_call.1} parent=0
    #allocation3 [shape = 'u8[2048]{0}', space=vmem, size = 0x800, scoped, tag = 'output window, operand 0']
    #allocation4 [shape = 's32[2]{0}', space=sflag, size = 0x8, scoped, tag = 'scoped memory for tpu_custom_call.1']
    %13 = vsyncpa [#allocation4], 0
    %s14 = scalar_lea.sflag [#allocation4], 1
    %15 = vsyncpa %s14, 0
    loop: start=0, step=1, limit=4
    $region2: #{tpu_custom_call.1} parent=1 // loop_pre_header
      _
    $region3: #{tpu_custom_call.1} parent=1 // loop_header
      %s17 = sphi 0, %s21
      %p18 = scmp.ge.s32.totalorder %s17, 4
      %s27 = sphi 0, %s29
      %s30 = sphi 0, %s27
      %s31 = sphi 0, %s30
      %s47 = sphi 0, %s31
      %s51 = sphi 0, %s51
      %s53 = sphi 0, %s51
      %s54 = sphi 0, %s53
      %s68 = sphi 0, %s54
      %s72 = sphi 0, %s72
      %s74 = sphi 0, %s72
      %s75 = sphi 0, %s74
      %s89 = sphi 0, %s75
      %s93 = sphi 0, %s93
      %s95 = sphi 0, %s93
      %s96 = sphi 0, %s95
      %s110 = sphi 0, %s96
      %s114 = sphi 0, %s114
      %s116 = sphi 0, %s114
      %s117 = sphi 0, %s116
      %s131 = sphi 0, %s117
      %s135 = sphi 0, %s135
      %s137 = sphi 0, %s135
      %s138 = sphi 0, %s137
      %s152 = sphi 0, %s138
      %s156 = sphi 0, %s156
      %s158 = sphi 0, %s156
      %s159 = sphi 0, %s158
      %s173 = sphi 0, %s159
      %s179 = sphi 0, %s181
      %s182 = sphi 0, %s179
      %s183 = sphi 0, %s182
      %s199 = sphi 0, %s183
    $region4: #{tpu_custom_call.1} parent=1 // loop_header_branch
      %20 = sbr.rel (%p18) target = $region8
    $region5: #{tpu_custom_call.1} parent=1 // loop_body
      %s22 = ssub.s32 %s17, 1
      %s23 = ssub.s32 %s17, 2
      %s24 = sadd.s32 %s17, 1
      %s25 = ssub.s32 %s17, %s24
      %p26 = scmp.eq.s32.totalorder %s25, 0
      %s28 = sadd.s32 %s27, 1
      %s29 = scalar_select %p26, %s27, %s28
      %p32 = pneg %p26
      %p33 = scmp.eq.s32.totalorder %s17, 1
      %p34 = por %p32, %p33
      %p35 = scmp.ne.s32.totalorder %s27, %s30
      %p36 = scmp.eq.s32.totalorder %s17, 0
      %p37 = por %p35, %p36
      %p38 = scmp.ne.s32.totalorder %s27, %s30
      %p39 = scmp.eq.s32.totalorder %s22, 1
      %p40 = por %p38, %p39
      %p41 = scmp.ne.s32.totalorder %s30, %s31
      %p42 = scmp.eq.s32.totalorder %s22, 0
      %p43 = por %p41, %p42
      %p44 = scmp.ne.s32.totalorder %s30, %s31
      %p45 = scmp.eq.s32.totalorder %s23, 1
      %p46 = por %p44, %p45
      %p48 = scmp.ne.s32.totalorder %s31, %s47
      %p49 = scmp.eq.s32.totalorder %s23, 0
      %p50 = por %p48, %p49
      %s52 = sadd.s32 %s51, 1
      %p55 = scmp.eq.s32.totalorder %s17, 1
      %p56 = scmp.ne.s32.totalorder %s51, %s53
      %p57 = scmp.eq.s32.totalorder %s17, 0
      %p58 = por %p56, %p57
      %p59 = scmp.ne.s32.totalorder %s51, %s53
      %p60 = scmp.eq.s32.totalorder %s22, 1
      %p61 = por %p59, %p60
      %p62 = scmp.ne.s32.totalorder %s53, %s54
      %p63 = scmp.eq.s32.totalorder %s22, 0
      %p64 = por %p62, %p63
      %p65 = scmp.ne.s32.totalorder %s53, %s54
      %p66 = scmp.eq.s32.totalorder %s23, 1
      %p67 = por %p65, %p66
      %p69 = scmp.ne.s32.totalorder %s54, %s68
      %p70 = scmp.eq.s32.totalorder %s23, 0
      %p71 = por %p69, %p70
      %s73 = sadd.s32 %s72, 1
      %p76 = scmp.eq.s32.totalorder %s17, 1
      %p77 = scmp.ne.s32.totalorder %s72, %s74
      %p78 = scmp.eq.s32.totalorder %s17, 0
      %p79 = por %p77, %p78
      %p80 = scmp.ne.s32.totalorder %s72, %s74
      %p81 = scmp.eq.s32.totalorder %s22, 1
      %p82 = por %p80, %p81
      %p83 = scmp.ne.s32.totalorder %s74, %s75
      %p84 = scmp.eq.s32.totalorder %s22, 0
      %p85 = por %p83, %p84
      %p86 = scmp.ne.s32.totalorder %s74, %s75
      %p87 = scmp.eq.s32.totalorder %s23, 1
      %p88 = por %p86, %p87
      %p90 = scmp.ne.s32.totalorder %s75, %s89
      %p91 = scmp.eq.s32.totalorder %s23, 0
      %p92 = por %p90, %p91
      %s94 = sadd.s32 %s93, 1
      %p97 = scmp.eq.s32.totalorder %s17, 1
      %p98 = scmp.ne.s32.totalorder %s93, %s95
      %p99 = scmp.eq.s32.totalorder %s17, 0
      %p100 = por %p98, %p99
      %p101 = scmp.ne.s32.totalorder %s93, %s95
      %p102 = scmp.eq.s32.totalorder %s22, 1
      %p103 = por %p101, %p102
      %p104 = scmp.ne.s32.totalorder %s95, %s96
      %p105 = scmp.eq.s32.totalorder %s22, 0
      %p106 = por %p104, %p105
      %p107 = scmp.ne.s32.totalorder %s95, %s96
      %p108 = scmp.eq.s32.totalorder %s23, 1
      %p109 = por %p107, %p108
      %p111 = scmp.ne.s32.totalorder %s96, %s110
      %p112 = scmp.eq.s32.totalorder %s23, 0
      %p113 = por %p111, %p112
      %s115 = sadd.s32 %s114, 1
      %p118 = scmp.eq.s32.totalorder %s17, 1
      %p119 = scmp.ne.s32.totalorder %s114, %s116
      %p120 = scmp.eq.s32.totalorder %s17, 0
      %p121 = por %p119, %p120
      %p122 = scmp.ne.s32.totalorder %s114, %s116
      %p123 = scmp.eq.s32.totalorder %s22, 1
      %p124 = por %p122, %p123
      %p125 = scmp.ne.s32.totalorder %s116, %s117
      %p126 = scmp.eq.s32.totalorder %s22, 0
      %p127 = por %p125, %p126
      %p128 = scmp.ne.s32.totalorder %s116, %s117
      %p129 = scmp.eq.s32.totalorder %s23, 1
      %p130 = por %p128, %p129
      %p132 = scmp.ne.s32.totalorder %s117, %s131
      %p133 = scmp.eq.s32.totalorder %s23, 0
      %p134 = por %p132, %p133
      %s136 = sadd.s32 %s135, 1
      %p139 = scmp.eq.s32.totalorder %s17, 1
      %p140 = scmp.ne.s32.totalorder %s135, %s137
      %p141 = scmp.eq.s32.totalorder %s17, 0
      %p142 = por %p140, %p141
      %p143 = scmp.ne.s32.totalorder %s135, %s137
      %p144 = scmp.eq.s32.totalorder %s22, 1
      %p145 = por %p143, %p144
      %p146 = scmp.ne.s32.totalorder %s137, %s138
      %p147 = scmp.eq.s32.totalorder %s22, 0
      %p148 = por %p146, %p147
      %p149 = scmp.ne.s32.totalorder %s137, %s138
      %p150 = scmp.eq.s32.totalorder %s23, 1
      %p151 = por %p149, %p150
      %p153 = scmp.ne.s32.totalorder %s138, %s152
      %p154 = scmp.eq.s32.totalorder %s23, 0
      %p155 = por %p153, %p154
      %s157 = sadd.s32 %s156, 1
      %p160 = scmp.eq.s32.totalorder %s17, 1
      %p161 = scmp.ne.s32.totalorder %s156, %s158
      %p162 = scmp.eq.s32.totalorder %s17, 0
      %p163 = por %p161, %p162
      %p164 = scmp.ne.s32.totalorder %s156, %s158
      %p165 = scmp.eq.s32.totalorder %s22, 1
      %p166 = por %p164, %p165
      %p167 = scmp.ne.s32.totalorder %s158, %s159
      %p168 = scmp.eq.s32.totalorder %s22, 0
      %p169 = por %p167, %p168
      %p170 = scmp.ne.s32.totalorder %s158, %s159
      %p171 = scmp.eq.s32.totalorder %s23, 1
      %p172 = por %p170, %p171
      %p174 = scmp.ne.s32.totalorder %s159, %s173
      %p175 = scmp.eq.s32.totalorder %s23, 0
      %p176 = por %p174, %p175
      %s177 = ssub.s32 %s17, %s24
      %p178 = scmp.eq.s32.totalorder %s177, 0
      %s180 = sadd.s32 %s179, 1
      %s181 = scalar_select %p178, %s179, %s180
      %p184 = pneg %p178
      %p185 = scmp.eq.s32.totalorder %s17, 1
      %p186 = por %p184, %p185
      %p187 = scmp.ne.s32.totalorder %s179, %s182
      %p188 = scmp.eq.s32.totalorder %s17, 0
      %p189 = por %p187, %p188
      %p190 = scmp.ne.s32.totalorder %s179, %s182
      %p191 = scmp.eq.s32.totalorder %s22, 1
      %p192 = por %p190, %p191
      %p193 = scmp.ne.s32.totalorder %s182, %s183
      %p194 = scmp.eq.s32.totalorder %s22, 0
      %p195 = por %p193, %p194
      %p196 = scmp.ne.s32.totalorder %s182, %s183
      %p197 = scmp.eq.s32.totalorder %s23, 1
      %p198 = por %p196, %p197
      %p200 = scmp.ne.s32.totalorder %s183, %s199
      %p201 = scmp.eq.s32.totalorder %s23, 0
      %p202 = por %p200, %p201
      %p203 = scmp.le.s32.totalorder 1, %s17
      %p204 = scmp.lt.s32.totalorder %s17, 3
      %p205 = pnand %p203, %p204
      %p206 = pneg %p205
      // Predicated region
      $region9: #{tpu_custom_call.1} parent=5 // pred_check
        _
      $region10: #{tpu_custom_call.1} parent=5 // pred_check_branch
        %208 = sbr.rel (%p205) target = $region12
      $region11: #{tpu_custom_call.1} parent=5 // pred_region
        %s209 = ssub.s32 %s17, 1
        // Predicated region
        $region13: #{tpu_custom_call.1} parent=11 // pred_check
          %p210 = pneg %p64
        $region14: #{tpu_custom_call.1} parent=11 // pred_check_branch
          %212 = sbr.rel (%p210) target = $region16
        $region15: #{tpu_custom_call.1} parent=11 // pred_region
          _
        $region16: #{tpu_custom_call.1} parent=11 // pred_fallthru
          _
        // Predicated region
        $region17: #{tpu_custom_call.1} parent=11 // pred_check
          %p213 = pneg %p85
        $region18: #{tpu_custom_call.1} parent=11 // pred_check_branch
          %215 = sbr.rel (%p213) target = $region20
        $region19: #{tpu_custom_call.1} parent=11 // pred_region
          _
        $region20: #{tpu_custom_call.1} parent=11 // pred_fallthru
          _
        // Predicated region
        $region21: #{tpu_custom_call.1} parent=11 // pred_check
          %p216 = pneg %p106
        $region22: #{tpu_custom_call.1} parent=11 // pred_check_branch
          %218 = sbr.rel (%p216) target = $region24
        $region23: #{tpu_custom_call.1} parent=11 // pred_region
          _
        $region24: #{tpu_custom_call.1} parent=11 // pred_fallthru
          _
        // Predicated region
        $region25: #{tpu_custom_call.1} parent=11 // pred_check
          %p219 = pneg %p127
        $region26: #{tpu_custom_call.1} parent=11 // pred_check_branch
          %221 = sbr.rel (%p219) target = $region28
        $region27: #{tpu_custom_call.1} parent=11 // pred_region
          _
        $region28: #{tpu_custom_call.1} parent=11 // pred_fallthru
          _
        // Predicated region
        $region29: #{tpu_custom_call.1} parent=11 // pred_check
          %p222 = pneg %p148
        $region30: #{tpu_custom_call.1} parent=11 // pred_check_branch
          %224 = sbr.rel (%p222) target = $region32
        $region31: #{tpu_custom_call.1} parent=11 // pred_region
          _
        $region32: #{tpu_custom_call.1} parent=11 // pred_fallthru
          _
        // Predicated region
        $region33: #{tpu_custom_call.1} parent=11 // pred_check
          %p225 = pneg %p169
        $region34: #{tpu_custom_call.1} parent=11 // pred_check_branch
          %227 = sbr.rel (%p225) target = $region36
        $region35: #{tpu_custom_call.1} parent=11 // pred_region
          _
        $region36: #{tpu_custom_call.1} parent=11 // pred_fallthru
          _
      $region12: #{tpu_custom_call.1} parent=5 // pred_fallthru
        _
      %p228 = scmp.lt.s32.totalorder %s17, 2
      // Predicated region
      $region37: #{tpu_custom_call.1} parent=5 // pred_check
        %p229 = pneg %p228
      $region38: #{tpu_custom_call.1} parent=5 // pred_check_branch
        %231 = sbr.rel (%p229) target = $region40
      $region39: #{tpu_custom_call.1} parent=5 // pred_region
        // Predicated region
        $region41: #{tpu_custom_call.1} parent=39 // pred_check
          %p232 = pneg %p37
        $region42: #{tpu_custom_call.1} parent=39 // pred_check_branch
          %234 = sbr.rel (%p232) target = $region44
        $region43: #{tpu_custom_call.1} parent=39 // pred_region
          %s235 = smul.u32 32, %s17
          %s236 = ssub.s32 38, %s235
          %p237 = scmp.lt.s32.totalorder %s236, 32
          %s238 = scalar_select %p237, %s236, 32
          %s239 = smul.u32 128, %s238
          %p240 = scmp.lt.s32.totalorder %s235, 37
          %s241 = scalar_select %p240, %s235, 37
          %s242 = smul.addr %s241, 8
          %s243 = scalar_lea.vmem %s0, %s242
          %s244 = smul.u32 32, %s17
          %s245 = ssub.s32 38, %s244
          %p246 = scmp.lt.s32.totalorder %s245, 32
          %s247 = scalar_select %p246, %s245, 32
          %s248 = smul.u32 128, %s247
        $region44: #{tpu_custom_call.1} parent=39 // pred_fallthru
          _
      $region40: #{tpu_custom_call.1} parent=5 // pred_fallthru
        _
      %p249 = scmp.le.s32.totalorder 1, %s17
      %p250 = scmp.lt.s32.totalorder %s17, 3
      %p251 = pnand %p249, %p250
      %p252 = pneg %p251
      // Predicated region
      $region45: #{tpu_custom_call.1} parent=5 // pred_check
        _
      $region46: #{tpu_custom_call.1} parent=5 // pred_check_branch
        %254 = sbr.rel (%p251) target = $region48
      $region47: #{tpu_custom_call.1} parent=5 // pred_region
        %s255 = ssub.s32 %s17, 1
        %s256 = smul.u32 32, %s22
        %s257 = ssub.s32 38, %s256
        %p258 = scmp.lt.s32.totalorder %s257, 32
        %s259 = scalar_select %p258, %s257, 32
        %s260 = smul.u32 128, %s259
        %p261 = scmp.lt.s32.totalorder %s256, 37
        %s262 = scalar_select %p261, %s256, 37
        %s263 = smul.addr %s262, 8
        %s264 = scalar_lea.vmem %s0, %s263
        %p265 = pneg %p43
        %p266 = pneg %p40
        %p267 = pneg %p64
        %p268 = pneg %p61
        %p269 = pneg %p85
        %p270 = pneg %p82
        %p271 = pneg %p106
        %p272 = pneg %p103
        %p273 = pneg %p127
        %p274 = pneg %p124
        %p275 = pneg %p148
        %p276 = pneg %p145
        %p277 = pneg %p169
        %p278 = pneg %p166
        %p279 = pneg %p195
        %p280 = pneg %p192
        %s281 = sand.u32 %s182, 1
        %s282 = scalar_lea.sflag [#allocation4], %s281
        %s283 = sand.u32 %s182, 1
        %s284 = smul.addr %s283, 2
        %s285 = scalar_lea.vmem [#allocation3], %s284
        %s286 = smul.u32 32, %s22
        %s287 = ssub.s32 38, %s286
        %p288 = scmp.lt.s32.totalorder %s287, 32
        %s289 = scalar_select %p288, %s287, 32
        %s290 = smul.u32 128, %s289
        %p291 = scmp.lt.s32.totalorder %s286, 37
        %s292 = scalar_select %p291, %s286, 37
        %s293 = smul.addr %s292, 8
        %s294 = scalar_lea.vmem %s0, %s293
        %s295 = smul.u32 32, %s22
        %s296 = ssub.s32 38, %s295
        %p297 = scmp.lt.s32.totalorder %s296, 32
        %s298 = scalar_select %p297, %s296, 32
        %s299 = smul.u32 128, %s298
        %s300 = smul.u32 2, %s22
        %s301 = ssub.s32 3, %s300
        %p302 = scmp.lt.s32.totalorder %s301, 2
        %s303 = scalar_select %p302, %s301, 2
        %s304 = smul.u32 16, %s303
        %v306 = vld [vmem:[%s294] sm:$0xff]
        %v307 = vld [vmem:[%s294 + $0x8] sm:$0xff]
        %v308 = vld [vmem:[%s294 + $0x10] sm:$0xff]
        %v309 = vld [vmem:[%s294 + $0x18] sm:$0xff]
        %v310 = vld [vmem:[%s294 + $0x20] sm:$0xff]
        %v311 = vld [vmem:[%s294 + $0x28] sm:$0xff]
        %v312 = vld [vmem:[%s294 + $0x30] sm:$0xff]
        %v313 = vld [vmem:[%s294 + $0x38] sm:$0xff]
        %v314 = vld [vmem:[%s294 + $0x40] sm:$0xff]
        %v315 = vld [vmem:[%s294 + $0x48] sm:$0xff]
        %v316 = vld [vmem:[%s294 + $0x50] sm:$0xff]
        %v317 = vld [vmem:[%s294 + $0x58] sm:$0xff]
        %v318 = vld [vmem:[%s294 + $0x60] sm:$0xff]
        %v319 = vld [vmem:[%s294 + $0x68] sm:$0xff]
        %v320 = vld [vmem:[%s294 + $0x70] sm:$0xff]
        %v321 = vld [vmem:[%s294 + $0x78] sm:$0xff]
        %v322 = vld [vmem:[%s294 + $0x80] sm:$0xff]
        %v323 = vld [vmem:[%s294 + $0x88] sm:$0xff]
        %v324 = vld [vmem:[%s294 + $0x90] sm:$0xff]
        %v325 = vld [vmem:[%s294 + $0x98] sm:$0xff]
        %v326 = vld [vmem:[%s294 + $0xa0] sm:$0xff]
        %v327 = vld [vmem:[%s294 + $0xa8] sm:$0xff]
        %v328 = vld [vmem:[%s294 + $0xb0] sm:$0xff]
        %v329 = vld [vmem:[%s294 + $0xb8] sm:$0xff]
        %v330 = vld [vmem:[%s294 + $0xc0] sm:$0xff]
        %v331 = vld [vmem:[%s294 + $0xc8] sm:$0xff]
        %v332 = vld [vmem:[%s294 + $0xd0] sm:$0xff]
        %v333 = vld [vmem:[%s294 + $0xd8] sm:$0xff]
        %v334 = vld [vmem:[%s294 + $0xe0] sm:$0xff]
        %v335 = vld [vmem:[%s294 + $0xe8] sm:$0xff]
        %v336 = vld [vmem:[%s294 + $0xf0] sm:$0xff]
        %v337 = vld [vmem:[%s294 + $0xf8] sm:$0xff]
        %v338 = vpack.c.bf16 %v307, %v306
        %v339 = vpack.c.bf16 %v309, %v308
        %v340 = vpack.c.bf16 %v311, %v310
        %v341 = vpack.c.bf16 %v313, %v312
        %v342 = vpack.c.bf16 %v315, %v314
        %v343 = vpack.c.bf16 %v317, %v316
        %v344 = vpack.c.bf16 %v319, %v318
        %v345 = vpack.c.bf16 %v321, %v320
        %v346 = vpack.c.bf16 %v323, %v322
        %v347 = vpack.c.bf16 %v325, %v324
        %v348 = vpack.c.bf16 %v327, %v326
        %v349 = vpack.c.bf16 %v329, %v328
        %v350 = vpack.c.bf16 %v331, %v330
        %v351 = vpack.c.bf16 %v333, %v332
        %v352 = vpack.c.bf16 %v335, %v334
        %v353 = vpack.c.bf16 %v337, %v336
        %v354 = vld [vmem:[%s1] sm:$0xf]
        %v355 = vld [vmem:[%s1 + $0x4] sm:$0xf]
        %v356 = vld [vmem:[%s1 + $0x8] sm:$0xf]
        %v357 = vld [vmem:[%s1 + $0xc] sm:$0xf]
        %v358 = vld [vmem:[%s2] sm:$0xff]
        %v359 = vld [vmem:[%s2 + $0x8] sm:$0xff]
        %v360 = vld [vmem:[%s2 + $0x10] sm:$0xff]
        %v361 = vld [vmem:[%s2 + $0x18] sm:$0xff]
        %363 = vset.pattern.permute.xlu0 0
        %364 = vperm.xlu0 %363, %v358
        %v365 = vpop.permute.xlu0 %364
        %368 = vset.pattern.permute.xlu0 0
        %369 = vperm.xlu0 %368, %v359
        %v370 = vpop.permute.xlu0 %369
        %373 = vset.pattern.permute.xlu0 0
        %374 = vperm.xlu0 %373, %v360
        %v375 = vpop.permute.xlu0 %374
        %378 = vset.pattern.permute.xlu0 0
        %379 = vperm.xlu0 %378, %v361
        %v380 = vpop.permute.xlu0 %379
        %v386 = vunpack.c.l.b16 %v354
        %v387 = vunpack.c.l.b16 %v355
        %v388 = vunpack.c.l.b16 %v356
        %v389 = vunpack.c.l.b16 %v357
        %v390 = vpack.c.b16 %v387, %v386
        %v391 = vpack.c.b16 %v389, %v388
        %vm392 = vcmask 64512
        %v394 = vsel %vm392, %v390, 0
        %v397 = vsel %vm392, %v391, 0
        %v400 = vsel %vm392, %v338, 0
        %v403 = vsel %vm392, %v339, 0
        %v406 = vsel %vm392, %v340, 0
        %v409 = vsel %vm392, %v341, 0
        %v412 = vsel %vm392, %v342, 0
        %v415 = vsel %vm392, %v343, 0
        %v418 = vsel %vm392, %v344, 0
        %v421 = vsel %vm392, %v345, 0
        %v424 = vsel %vm392, %v346, 0
        %v427 = vsel %vm392, %v347, 0
        %v430 = vsel %vm392, %v348, 0
        %v433 = vsel %vm392, %v349, 0
        %v436 = vsel %vm392, %v350, 0
        %v439 = vsel %vm392, %v351, 0
        %v442 = vsel %vm392, %v352, 0
        %v445 = vsel %vm392, %v353, 0
        %447 = vmatprep.subr.bf16.mxu0 0
        %448 = vmatpush1.bf16.xpose.msra.mxu0 %v421
        %449 = vmatprep.subr.bf16.mxu0 0
        %450 = vmatpush1.bf16.xpose.msra.mxu0 %v418
        %451 = vmatprep.subr.bf16.mxu0 0
        %452 = vmatpush1.bf16.xpose.msra.mxu0 %v415
        %453 = vmatprep.subr.bf16.mxu0 0
        %454 = vmatpush1.bf16.xpose.msra.mxu0 %v412
        %455 = vmatprep.subr.bf16.mxu0 0
        %456 = vmatpush1.bf16.xpose.msra.mxu0 %v409
        %457 = vmatprep.subr.bf16.mxu0 0
        %458 = vmatpush1.bf16.xpose.msra.mxu0 %v406
        %459 = vmatprep.subr.bf16.mxu0 0
        %460 = vmatpush1.bf16.xpose.msra.mxu0 %v403
        %461 = vmatprep.subr.bf16.mxu0 0
        %462 = vmatpush1.bf16.xpose.msra.mxu0 %v400
        %463 = vmatprep.subr.bf16.mxu0 0
        %464 = vmatpush2.bf16.xpose.msra.mxu0 %v445
        %465 = vmatprep.subr.bf16.mxu0 0
        %466 = vmatpush2.bf16.xpose.msra.mxu0 %v442
        %467 = vmatprep.subr.bf16.mxu0 0
        %468 = vmatpush2.bf16.xpose.msra.mxu0 %v439
        %469 = vmatprep.subr.bf16.mxu0 0
        %470 = vmatpush2.bf16.xpose.msra.mxu0 %v436
        %471 = vmatprep.subr.bf16.mxu0 0
        %472 = vmatpush2.bf16.xpose.msra.mxu0 %v433
        %473 = vmatprep.subr.bf16.mxu0 0
        %474 = vmatpush2.bf16.xpose.msra.mxu0 %v430
        %475 = vmatprep.subr.bf16.mxu0 0
        %476 = vmatpush2.bf16.xpose.msra.mxu0 %v427
        %477 = vmatprep.subr.bf16.mxu0 0
        %478 = vmatpush2.bf16.xpose.msra.mxu0 %v424
        %479 = vmatprep.mubr.bf16.mxu0 0
        %480 = vmatmul.mubr.bf16.gmra.mxu0 %v394
        %v481 = vpop.f32.mrf.mxu0
        %v482 = vadd.f32 %v365, %v481
        %v483 = vpop.f32.mrf.mxu0
        %v484 = vadd.f32 %v365, %v483
        %v485 = vpop.f32.mrf.mxu0
        %v486 = vadd.f32 %v370, %v485
        %v487 = vpop.f32.mrf.mxu0
        %v488 = vadd.f32 %v370, %v487
        %489 = vmatprep.mubr.bf16.mxu0 0
        %490 = vmatmul.mubr.bf16.gmra.mxu0 %v397
        %v491 = vpop.f32.mrf.mxu0
        %v492 = vadd.f32 %v375, %v491
        %v493 = vpop.f32.mrf.mxu0
        %v494 = vadd.f32 %v375, %v493
        %v495 = vpop.f32.mrf.mxu0
        %v496 = vadd.f32 %v380, %v495
        %v497 = vpop.f32.mrf.mxu0
        %v498 = vadd.f32 %v380, %v497
        %499 = vdwg.mxu0
        %v500 = vmax.f32 %v482, 0.0
        %v501 = vmax.f32 %v484, 0.0
        %v502 = vmax.f32 %v486, 0.0
        %v503 = vmax.f32 %v488, 0.0
        %v504 = vmax.f32 %v492, 0.0
        %v505 = vmax.f32 %v494, 0.0
        %v506 = vmax.f32 %v496, 0.0
        %v507 = vmax.f32 %v498, 0.0
        %v508 = vld [vmem:[%s3] sm:$0xf]
        %v509 = vld [vmem:[%s3 + $0x4] sm:$0xf]
        %v510 = vld [vmem:[%s3 + $0x8] sm:$0xf]
        %v511 = vld [vmem:[%s3 + $0xc] sm:$0xf]
        %v512 = vld [vmem:[%s4] sm:$0xff]
        %v513 = vld [vmem:[%s4 + $0x8] sm:$0xff]
        %v514 = vld [vmem:[%s4 + $0x10] sm:$0xff]
        %v515 = vld [vmem:[%s4 + $0x18] sm:$0xff]
        %v516 = vpack.c.bf16 %v502, %v500
        %v517 = vpack.c.bf16 %v503, %v501
        %v518 = vpack.c.bf16 %v506, %v504
        %v519 = vpack.c.bf16 %v507, %v505
        %521 = vset.pattern.permute.xlu0 0
        %522 = vperm.xlu0 %521, %v512
        %v523 = vpop.permute.xlu0 %522
        %526 = vset.pattern.permute.xlu0 0
        %527 = vperm.xlu0 %526, %v513
        %v528 = vpop.permute.xlu0 %527
        %531 = vset.pattern.permute.xlu0 0
        %532 = vperm.xlu0 %531, %v514
        %v533 = vpop.permute.xlu0 %532
        %536 = vset.pattern.permute.xlu0 0
        %537 = vperm.xlu0 %536, %v515
        %v538 = vpop.permute.xlu0 %537
        %v544 = vunpack.c.l.b16 %v508
        %v545 = vunpack.c.l.b16 %v509
        %v546 = vunpack.c.l.b16 %v510
        %v547 = vunpack.c.l.b16 %v511
        %v548 = vpack.c.b16 %v545, %v544
        %v549 = vpack.c.b16 %v547, %v546
        %vm550 = vcmask 261120
        %v552 = vsel %vm550, %v548, 0
        %v555 = vsel %vm550, %v549, 0
        %557 = vmatprep.subr.bf16.mxu0 0
        %558 = vmatpush1.bf16.msra.mxu0 0
        %559 = vmatprep.subr.bf16.mxu0 0
        %560 = vmatpush1.bf16.msra.mxu0 0
        %561 = vmatprep.subr.bf16.mxu0 0
        %562 = vmatpush1.bf16.msra.mxu0 0
        %563 = vmatprep.subr.bf16.mxu0 0
        %564 = vmatpush1.bf16.msra.mxu0 0
        %565 = vmatprep.subr.bf16.mxu0 0
        %566 = vmatpush1.bf16.msra.mxu0 0
        %567 = vmatprep.subr.bf16.mxu0 0
        %568 = vmatpush1.bf16.msra.mxu0 0
        %569 = vmatprep.subr.bf16.mxu0 %v519
        %570 = vmatpush1.bf16.msra.mxu0 %v518
        %571 = vmatprep.subr.bf16.mxu0 %v517
        %572 = vmatpush1.bf16.msra.mxu0 %v516
        %573 = vmatprep.subr.bf16.mxu0 0
        %574 = vmatpush2.bf16.msra.mxu0 0
        %575 = vmatprep.subr.bf16.mxu0 0
        %576 = vmatpush2.bf16.msra.mxu0 0
        %577 = vmatprep.subr.bf16.mxu0 0
        %578 = vmatpush2.bf16.msra.mxu0 0
        %579 = vmatprep.subr.bf16.mxu0 0
        %580 = vmatpush2.bf16.msra.mxu0 0
        %581 = vmatprep.subr.bf16.mxu0 0
        %582 = vmatpush2.bf16.msra.mxu0 0
        %583 = vmatprep.subr.bf16.mxu0 0
        %584 = vmatpush2.bf16.msra.mxu0 0
        %585 = vmatprep.subr.bf16.mxu0 0
        %586 = vmatpush2.bf16.msra.mxu0 0
        %587 = vmatprep.subr.bf16.mxu0 0
        %588 = vmatpush2.bf16.msra.mxu0 0
        %589 = vmatprep.mubr.bf16.mxu0 0
        %590 = vmatmul.mubr.bf16.gmra.mxu0 %v552
        %v591 = vpop.f32.mrf.mxu0
        %v592 = vadd.f32 %v523, %v591
        %v593 = vpop.f32.mrf.mxu0
        %v594 = vadd.f32 %v523, %v593
        %v595 = vpop.f32.mrf.mxu0
        %v596 = vadd.f32 %v528, %v595
        %v597 = vpop.f32.mrf.mxu0
        %v598 = vadd.f32 %v528, %v597
        %599 = vmatprep.mubr.bf16.mxu0 0
        %600 = vmatmul.mubr.bf16.gmra.mxu0 %v555
        %v601 = vpop.f32.mrf.mxu0
        %v602 = vadd.f32 %v533, %v601
        %v603 = vpop.f32.mrf.mxu0
        %v604 = vadd.f32 %v533, %v603
        %v605 = vpop.f32.mrf.mxu0
        %v606 = vadd.f32 %v538, %v605
        %v607 = vpop.f32.mrf.mxu0
        %v608 = vadd.f32 %v538, %v607
        %609 = vdwg.mxu0
        %v610 = vmax.f32 %v592, 0.0
        %v611 = vmax.f32 %v594, 0.0
        %v612 = vmax.f32 %v596, 0.0
        %v613 = vmax.f32 %v598, 0.0
        %v614 = vmax.f32 %v602, 0.0
        %v615 = vmax.f32 %v604, 0.0
        %v616 = vmax.f32 %v606, 0.0
        %v617 = vmax.f32 %v608, 0.0
        %s618 = scalar_lea.vmem %s3, 16
        %v619 = vld [vmem:[%s618] sm:$0xf]
        %v620 = vld [vmem:[%s618 + $0x4] sm:$0xf]
        %v621 = vld [vmem:[%s618 + $0x8] sm:$0xf]
        %v622 = vld [vmem:[%s618 + $0xc] sm:$0xf]
        %s623 = scalar_lea.vmem %s4, 32
        %v624 = vld [vmem:[%s623] sm:$0xff]
        %v625 = vld [vmem:[%s623 + $0x8] sm:$0xff]
        %v626 = vld [vmem:[%s623 + $0x10] sm:$0xff]
        %v627 = vld [vmem:[%s623 + $0x18] sm:$0xff]
        %v628 = vpack.c.bf16 %v612, %v610
        %v629 = vpack.c.bf16 %v613, %v611
        %v630 = vpack.c.bf16 %v616, %v614
        %v631 = vpack.c.bf16 %v617, %v615
        %633 = vset.pattern.permute.xlu0 0
        %634 = vperm.xlu0 %633, %v624
        %v635 = vpop.permute.xlu0 %634
        %638 = vset.pattern.permute.xlu0 0
        %639 = vperm.xlu0 %638, %v625
        %v640 = vpop.permute.xlu0 %639
        %643 = vset.pattern.permute.xlu0 0
        %644 = vperm.xlu0 %643, %v626
        %v645 = vpop.permute.xlu0 %644
        %648 = vset.pattern.permute.xlu0 0
        %649 = vperm.xlu0 %648, %v627
        %v650 = vpop.permute.xlu0 %649
        %v656 = vunpack.c.l.b16 %v619
        %v657 = vunpack.c.l.b16 %v620
        %v658 = vunpack.c.l.b16 %v621
        %v659 = vunpack.c.l.b16 %v622
        %v660 = vpack.c.b16 %v657, %v656
        %v661 = vpack.c.b16 %v659, %v658
        %v663 = vsel %vm550, %v660, 0
        %v666 = vsel %vm550, %v661, 0
        %668 = vmatprep.subr.bf16.mxu0 0
        %669 = vmatpush1.bf16.msra.mxu0 0
        %670 = vmatprep.subr.bf16.mxu0 0
        %671 = vmatpush1.bf16.msra.mxu0 0
        %672 = vmatprep.subr.bf16.mxu0 0
        %673 = vmatpush1.bf16.msra.mxu0 0
        %674 = vmatprep.subr.bf16.mxu0 0
        %675 = vmatpush1.bf16.msra.mxu0 0
        %676 = vmatprep.subr.bf16.mxu0 0
        %677 = vmatpush1.bf16.msra.mxu0 0
        %678 = vmatprep.subr.bf16.mxu0 0
        %679 = vmatpush1.bf16.msra.mxu0 0
        %680 = vmatprep.subr.bf16.mxu0 %v631
        %681 = vmatpush1.bf16.msra.mxu0 %v630
        %682 = vmatprep.subr.bf16.mxu0 %v629
        %683 = vmatpush1.bf16.msra.mxu0 %v628
        %684 = vmatprep.subr.bf16.mxu0 0
        %685 = vmatpush2.bf16.msra.mxu0 0
        %686 = vmatprep.subr.bf16.mxu0 0
        %687 = vmatpush2.bf16.msra.mxu0 0
        %688 = vmatprep.subr.bf16.mxu0 0
        %689 = vmatpush2.bf16.msra.mxu0 0
        %690 = vmatprep.subr.bf16.mxu0 0
        %691 = vmatpush2.bf16.msra.mxu0 0
        %692 = vmatprep.subr.bf16.mxu0 0
        %693 = vmatpush2.bf16.msra.mxu0 0
        %694 = vmatprep.subr.bf16.mxu0 0
        %695 = vmatpush2.bf16.msra.mxu0 0
        %696 = vmatprep.subr.bf16.mxu0 0
        %697 = vmatpush2.bf16.msra.mxu0 0
        %698 = vmatprep.subr.bf16.mxu0 0
        %699 = vmatpush2.bf16.msra.mxu0 0
        %700 = vmatprep.mubr.bf16.mxu0 0
        %701 = vmatmul.mubr.bf16.gmra.mxu0 %v663
        %v702 = vpop.f32.mrf.mxu0
        %v703 = vadd.f32 %v635, %v702
        %v704 = vpop.f32.mrf.mxu0
        %v705 = vadd.f32 %v635, %v704
        %v706 = vpop.f32.mrf.mxu0
        %v707 = vadd.f32 %v640, %v706
        %v708 = vpop.f32.mrf.mxu0
        %v709 = vadd.f32 %v640, %v708
        %710 = vmatprep.mubr.bf16.mxu0 0
        %711 = vmatmul.mubr.bf16.gmra.mxu0 %v666
        %v712 = vpop.f32.mrf.mxu0
        %v713 = vadd.f32 %v645, %v712
        %v714 = vpop.f32.mrf.mxu0
        %v715 = vadd.f32 %v645, %v714
        %v716 = vpop.f32.mrf.mxu0
        %v717 = vadd.f32 %v650, %v716
        %v718 = vpop.f32.mrf.mxu0
        %v719 = vadd.f32 %v650, %v718
        %720 = vdwg.mxu0
        %v721 = vmax.f32 %v703, 0.0
        %v722 = vmax.f32 %v705, 0.0
        %v723 = vmax.f32 %v707, 0.0
        %v724 = vmax.f32 %v709, 0.0
        %v725 = vmax.f32 %v713, 0.0
        %v726 = vmax.f32 %v715, 0.0
        %v727 = vmax.f32 %v717, 0.0
        %v728 = vmax.f32 %v719, 0.0
        %v729 = vld [vmem:[%s5] sm:$0xff]
        %v730 = vld [vmem:[%s5 + $0x8] sm:$0xff]
        %v731 = vld [vmem:[%s5 + $0x10] sm:$0xff]
        %v732 = vld [vmem:[%s5 + $0x18] sm:$0xff]
        %734 = vset.pattern.permute.xlu0 0
        %735 = vperm.xlu0 %734, %v729
        %v736 = vpop.permute.xlu0 %735
        %739 = vset.pattern.permute.xlu0 0
        %740 = vperm.xlu0 %739, %v730
        %v741 = vpop.permute.xlu0 %740
        %744 = vset.pattern.permute.xlu0 0
        %745 = vperm.xlu0 %744, %v731
        %v746 = vpop.permute.xlu0 %745
        %749 = vset.pattern.permute.xlu0 0
        %750 = vperm.xlu0 %749, %v732
        %v751 = vpop.permute.xlu0 %750
        %v753 = vmul.f32 %v721, %v736
        %v754 = vmul.f32 %v722, %v736
        %v755 = vmul.f32 %v723, %v741
        %v756 = vmul.f32 %v724, %v741
        %v757 = vmul.f32 %v725, %v746
        %v758 = vmul.f32 %v726, %v746
        %v759 = vmul.f32 %v727, %v751
        %v760 = vmul.f32 %v728, %v751
        %v761 = vadd.f32 %v753, %v755
        %v762 = vadd.f32 %v761, %v757
        %v763 = vadd.f32 %v762, %v759
        %v764 = vrot.slane %v763, 4
        %v765 = vadd.f32 %v763, %v764
        %v766 = vrot.slane %v765, 2
        %v767 = vadd.f32 %v765, %v766
        %v768 = vrot.slane %v767, 1
        %v769 = vadd.f32 %v767, %v768
        %v770 = vadd.f32 %v754, %v756
        %v771 = vadd.f32 %v770, %v758
        %v772 = vadd.f32 %v771, %v760
        %v773 = vrot.slane %v772, 4
        %v774 = vadd.f32 %v772, %v773
        %v775 = vrot.slane %v774, 2
        %v776 = vadd.f32 %v774, %v775
        %v777 = vrot.slane %v776, 1
        %v778 = vadd.f32 %v776, %v777
        %s779 = sld [smem:[#allocation2]]
        %v780 = vstv %s779
        %v781 = vadd.f32 %v769, %v780
        %v782 = vadd.f32 %v778, %v780
        %v785 = vcombine.low %v781, %v782
        %v787 = vunpack.c.l.s4 1966171168
        %v788 = vunpack.c.0.s8 %v787
        %v789 = vlaneseq
        %v790 = vshrl.u32 %v789, 7
        %v791 = vsub.s32 %v788, %v790
        %v792 = vrot.slane %v785, %v791
        %v794 = vunpack.c.l.s4 1966171168
        %v795 = vunpack.c.0.s8 %v794
        %v796 = vlaneseq
        %v797 = vshrl.u32 %v796, 7
        %v798 = vsub.s32 %v795, %v797
        %v799 = vrot.slane %v792, %v798
        %v801 = vlaneseq
        %vm802 = vcmp.ge.s32.totalorder %v801, 0
        %vm803 = vcmp.lt.s32.totalorder %v801, 256
        %vm804 = vmand %vm802, %vm803
        %805 = vst.msk [vmem:[%s285] sm:$0x3] %vm804, %v799
        %s806 = sand.u32 %s182, 1
        %s807 = scalar_lea.sflag [#allocation4], %s806
        %s808 = sand.u32 %s182, 1
        %s809 = smul.addr %s808, 2
        %s810 = scalar_lea.vmem [#allocation3], %s809
        // Predicated region
        $region49: #{tpu_custom_call.1} parent=47 // pred_check
          %p811 = pneg %p192
        $region50: #{tpu_custom_call.1} parent=47 // pred_check_branch
          %813 = sbr.rel (%p811) target = $region52
        $region51: #{tpu_custom_call.1} parent=47 // pred_region
          %s814 = smul.u32 2, %s22
          %s815 = ssub.s32 3, %s814
          %p816 = scmp.lt.s32.totalorder %s815, 2
          %s817 = scalar_select %p816, %s815, 2
          %s818 = smul.u32 16, %s817
          %s820 = ssub.s32 32, %s818
          %821 = vsyncadd %s807, %s820
          %p822 = scmp.ne.s32.totalorder 0, %s818
          %s823 = smul.addr %s814, 16
          %s824 = scalar_lea.hbm %s7, %s823
          %s825 = sshll.u32 %s817, 4
          %s826 = sshll.u32 %s810, 4
          %s827 = int_to_ptr.vmem [resolvable:$true] %s826
          %829 = dma.vmem_to_hbm [thread:$0]  (%p822), %s827, %s825, %s824, %s807
        $region52: #{tpu_custom_call.1} parent=47 // pred_fallthru
          _
      $region48: #{tpu_custom_call.1} parent=5 // pred_fallthru
        _
      %p830 = scmp.le.s32.totalorder 2, %s17
      // Predicated region
      $region53: #{tpu_custom_call.1} parent=5 // pred_check
        %p831 = pneg %p830
      $region54: #{tpu_custom_call.1} parent=5 // pred_check_branch
        %833 = sbr.rel (%p831) target = $region56
      $region55: #{tpu_custom_call.1} parent=5 // pred_region
        %s834 = ssub.s32 %s17, 2
        // Predicated region
        $region57: #{tpu_custom_call.1} parent=55 // pred_check
          %p835 = pneg %p198
        $region58: #{tpu_custom_call.1} parent=55 // pred_check_branch
          %837 = sbr.rel (%p835) target = $region60
        $region59: #{tpu_custom_call.1} parent=55 // pred_region
          %s838 = sand.u32 %s183, 1
          %s839 = scalar_lea.sflag [#allocation4], %s838
          %s840 = sand.u32 %s183, 1
          %s841 = smul.addr %s840, 2
          %s842 = scalar_lea.vmem [#allocation3], %s841
          %843 = dma.done %s839, 32
        $region60: #{tpu_custom_call.1} parent=55 // pred_fallthru
          _
      $region56: #{tpu_custom_call.1} parent=5 // pred_fallthru
        _
    $region6: #{tpu_custom_call.1} parent=1 // loop_footer
      %s21 = sadd.s32 1, %s17
    $region7: #{tpu_custom_call.1} parent=1 // loop_footer_branch
      %16 = sbr.rel target = $region3
    $region8: #{tpu_custom_call.1} parent=1 // loop_exit
      _
    %844 = vsyncpa [#allocation4], 1
    %s845 = scalar_lea.sflag [#allocation4], 1
    %846 = vsyncpa %s845, 1

// kernel: tpu_custom_call.1
$region0: #{tpu_custom_call.1}
  #allocation0 [shape = 'u32[]', space=smem, size = 0x4, offset = 0x4, fixed_abs, tag = 'smem constant byte address 0x4 - core index']
  #allocation1 [shape = 'u32[144,128]{1,0:T(1,128)}', space=vmem, size = 0x12000, scoped, tag = 'internal scratch']
  #allocation2 [shape = 'f32[1]{0:T(128)S(6)}', space=smem, size = 0x200, scoped, tag = 'scoped memory for tpu_custom_call.1']
  %s0 = inlined_call_operand.vmem [shape: f32[300,8], index: 0, kind: input, shape index: {}]
  %s1 = inlined_call_operand.vmem [shape: bf16[32,8], index: 1, kind: input, shape index: {}]
  %s2 = inlined_call_operand.vmem [shape: f32[32,1], index: 2, kind: input, shape index: {}]
  %s3 = inlined_call_operand.vmem [shape: bf16[2,32,32], index: 3, kind: input, shape index: {}]
  %s4 = inlined_call_operand.vmem [shape: f32[2,32,1], index: 4, kind: input, shape index: {}]
  %s5 = inlined_call_operand.vmem [shape: f32[32,1], index: 5, kind: input, shape index: {}]
  %s6 = inlined_call_operand.<no memory space> [shape: f32[1], index: 6, kind: input, shape index: {}]
  %s7 = inlined_call_operand.hbm [shape: f32[1,300], index: 7, kind: output, shape index: {}]
  %s8 = sld [smem:[#allocation0]]
  $region61: #{tpu_custom_call.1} parent=0
    _
  %s10 = ssub.s32 1, %s8
  %s11 = scalar_select 0, %s10, %s8
  %12 = sst [smem:[#allocation2]] %s6
  $region1: #{tpu_custom_call.1} parent=0
    #allocation3 [shape = 'u8[2048]{0}', space=vmem, size = 0x800, scoped, tag = 'output window, operand 0']
    #allocation4 [shape = 's32[2]{0}', space=sflag, size = 0x8, scoped, tag = 'scoped memory for tpu_custom_call.1']
    %13 = vsyncpa [#allocation4], 0
    %s14 = scalar_lea.sflag [#allocation4], 1
    %15 = vsyncpa %s14, 0
    loop: start=0, step=1, limit=4
    $region2: #{tpu_custom_call.1} parent=1 // loop_pre_header
      _
    $region3: #{tpu_custom_call.1} parent=1 // loop_header
      %s17 = sphi 0, %s21
      %p18 = scmp.ge.s32.totalorder %s17, 4
      %s27 = sphi 0, %s29
      %s30 = sphi 0, %s27
      %s31 = sphi 0, %s30
      %s47 = sphi 0, %s31
      %s51 = sphi 0, %s51
      %s53 = sphi 0, %s51
      %s54 = sphi 0, %s53
      %s68 = sphi 0, %s54
      %s72 = sphi 0, %s72
      %s74 = sphi 0, %s72
      %s75 = sphi 0, %s74
      %s89 = sphi 0, %s75
      %s93 = sphi 0, %s93
      %s95 = sphi 0, %s93
      %s96 = sphi 0, %s95
      %s110 = sphi 0, %s96
      %s114 = sphi 0, %s114
      %s116 = sphi 0, %s114
      %s117 = sphi 0, %s116
      %s131 = sphi 0, %s117
      %s135 = sphi 0, %s135
      %s137 = sphi 0, %s135
      %s138 = sphi 0, %s137
      %s152 = sphi 0, %s138
      %s156 = sphi 0, %s156
      %s158 = sphi 0, %s156
      %s159 = sphi 0, %s158
      %s173 = sphi 0, %s159
      %s179 = sphi 0, %s181
      %s182 = sphi 0, %s179
      %s183 = sphi 0, %s182
      %s199 = sphi 0, %s183
    $region4: #{tpu_custom_call.1} parent=1 // loop_header_branch
      %20 = sbr.rel (%p18) target = $region8
    $region5: #{tpu_custom_call.1} parent=1 // loop_body
      %s22 = ssub.s32 %s17, 1
      %s23 = ssub.s32 %s17, 2
      %s24 = sadd.s32 %s17, 1
      %s25 = ssub.s32 %s17, %s24
      %p26 = scmp.eq.s32.totalorder %s25, 0
      %s28 = sadd.s32 %s27, 1
      %s29 = scalar_select %p26, %s27, %s28
      %p32 = pneg %p26
      %p33 = scmp.eq.s32.totalorder %s17, 1
      %p34 = por %p32, %p33
      %p35 = scmp.ne.s32.totalorder %s27, %s30
      %p36 = scmp.eq.s32.totalorder %s17, 0
      %p37 = por %p35, %p36
      %p38 = scmp.ne.s32.totalorder %s27, %s30
      %p39 = scmp.eq.s32.totalorder %s22, 1
      %p40 = por %p38, %p39
      %p41 = scmp.ne.s32.totalorder %s30, %s31
      %p42 = scmp.eq.s32.totalorder %s22, 0
      %p43 = por %p41, %p42
      %p44 = scmp.ne.s32.totalorder %s30, %s31
      %p45 = scmp.eq.s32.totalorder %s23, 1
      %p46 = por %p44, %p45
      %p48 = scmp.ne.s32.totalorder %s31, %s47
      %p49 = scmp.eq.s32.totalorder %s23, 0
      %p50 = por %p48, %p49
      %s52 = sadd.s32 %s51, 1
      %p55 = scmp.eq.s32.totalorder %s17, 1
      %p56 = scmp.ne.s32.totalorder %s51, %s53
      %p57 = scmp.eq.s32.totalorder %s17, 0
      %p58 = por %p56, %p57
      %p59 = scmp.ne.s32.totalorder %s51, %s53
      %p60 = scmp.eq.s32.totalorder %s22, 1
      %p61 = por %p59, %p60
      %p62 = scmp.ne.s32.totalorder %s53, %s54
      %p63 = scmp.eq.s32.totalorder %s22, 0
      %p64 = por %p62, %p63
      %p65 = scmp.ne.s32.totalorder %s53, %s54
      %p66 = scmp.eq.s32.totalorder %s23, 1
      %p67 = por %p65, %p66
      %p69 = scmp.ne.s32.totalorder %s54, %s68
      %p70 = scmp.eq.s32.totalorder %s23, 0
      %p71 = por %p69, %p70
      %s73 = sadd.s32 %s72, 1
      %p76 = scmp.eq.s32.totalorder %s17, 1
      %p77 = scmp.ne.s32.totalorder %s72, %s74
      %p78 = scmp.eq.s32.totalorder %s17, 0
      %p79 = por %p77, %p78
      %p80 = scmp.ne.s32.totalorder %s72, %s74
      %p81 = scmp.eq.s32.totalorder %s22, 1
      %p82 = por %p80, %p81
      %p83 = scmp.ne.s32.totalorder %s74, %s75
      %p84 = scmp.eq.s32.totalorder %s22, 0
      %p85 = por %p83, %p84
      %p86 = scmp.ne.s32.totalorder %s74, %s75
      %p87 = scmp.eq.s32.totalorder %s23, 1
      %p88 = por %p86, %p87
      %p90 = scmp.ne.s32.totalorder %s75, %s89
      %p91 = scmp.eq.s32.totalorder %s23, 0
      %p92 = por %p90, %p91
      %s94 = sadd.s32 %s93, 1
      %p97 = scmp.eq.s32.totalorder %s17, 1
      %p98 = scmp.ne.s32.totalorder %s93, %s95
      %p99 = scmp.eq.s32.totalorder %s17, 0
      %p100 = por %p98, %p99
      %p101 = scmp.ne.s32.totalorder %s93, %s95
      %p102 = scmp.eq.s32.totalorder %s22, 1
      %p103 = por %p101, %p102
      %p104 = scmp.ne.s32.totalorder %s95, %s96
      %p105 = scmp.eq.s32.totalorder %s22, 0
      %p106 = por %p104, %p105
      %p107 = scmp.ne.s32.totalorder %s95, %s96
      %p108 = scmp.eq.s32.totalorder %s23, 1
      %p109 = por %p107, %p108
      %p111 = scmp.ne.s32.totalorder %s96, %s110
      %p112 = scmp.eq.s32.totalorder %s23, 0
      %p113 = por %p111, %p112
      %s115 = sadd.s32 %s114, 1
      %p118 = scmp.eq.s32.totalorder %s17, 1
      %p119 = scmp.ne.s32.totalorder %s114, %s116
      %p120 = scmp.eq.s32.totalorder %s17, 0
      %p121 = por %p119, %p120
      %p122 = scmp.ne.s32.totalorder %s114, %s116
      %p123 = scmp.eq.s32.totalorder %s22, 1
      %p124 = por %p122, %p123
      %p125 = scmp.ne.s32.totalorder %s116, %s117
      %p126 = scmp.eq.s32.totalorder %s22, 0
      %p127 = por %p125, %p126
      %p128 = scmp.ne.s32.totalorder %s116, %s117
      %p129 = scmp.eq.s32.totalorder %s23, 1
      %p130 = por %p128, %p129
      %p132 = scmp.ne.s32.totalorder %s117, %s131
      %p133 = scmp.eq.s32.totalorder %s23, 0
      %p134 = por %p132, %p133
      %s136 = sadd.s32 %s135, 1
      %p139 = scmp.eq.s32.totalorder %s17, 1
      %p140 = scmp.ne.s32.totalorder %s135, %s137
      %p141 = scmp.eq.s32.totalorder %s17, 0
      %p142 = por %p140, %p141
      %p143 = scmp.ne.s32.totalorder %s135, %s137
      %p144 = scmp.eq.s32.totalorder %s22, 1
      %p145 = por %p143, %p144
      %p146 = scmp.ne.s32.totalorder %s137, %s138
      %p147 = scmp.eq.s32.totalorder %s22, 0
      %p148 = por %p146, %p147
      %p149 = scmp.ne.s32.totalorder %s137, %s138
      %p150 = scmp.eq.s32.totalorder %s23, 1
      %p151 = por %p149, %p150
      %p153 = scmp.ne.s32.totalorder %s138, %s152
      %p154 = scmp.eq.s32.totalorder %s23, 0
      %p155 = por %p153, %p154
      %s157 = sadd.s32 %s156, 1
      %p160 = scmp.eq.s32.totalorder %s17, 1
      %p161 = scmp.ne.s32.totalorder %s156, %s158
      %p162 = scmp.eq.s32.totalorder %s17, 0
      %p163 = por %p161, %p162
      %p164 = scmp.ne.s32.totalorder %s156, %s158
      %p165 = scmp.eq.s32.totalorder %s22, 1
      %p166 = por %p164, %p165
      %p167 = scmp.ne.s32.totalorder %s158, %s159
      %p168 = scmp.eq.s32.totalorder %s22, 0
      %p169 = por %p167, %p168
      %p170 = scmp.ne.s32.totalorder %s158, %s159
      %p171 = scmp.eq.s32.totalorder %s23, 1
      %p172 = por %p170, %p171
      %p174 = scmp.ne.s32.totalorder %s159, %s173
      %p175 = scmp.eq.s32.totalorder %s23, 0
      %p176 = por %p174, %p175
      %s177 = ssub.s32 %s17, %s24
      %p178 = scmp.eq.s32.totalorder %s177, 0
      %s180 = sadd.s32 %s179, 1
      %s181 = scalar_select %p178, %s179, %s180
      %p184 = pneg %p178
      %p185 = scmp.eq.s32.totalorder %s17, 1
      %p186 = por %p184, %p185
      %p187 = scmp.ne.s32.totalorder %s179, %s182
      %p188 = scmp.eq.s32.totalorder %s17, 0
      %p189 = por %p187, %p188
      %p190 = scmp.ne.s32.totalorder %s179, %s182
      %p191 = scmp.eq.s32.totalorder %s22, 1
      %p192 = por %p190, %p191
      %p193 = scmp.ne.s32.totalorder %s182, %s183
      %p194 = scmp.eq.s32.totalorder %s22, 0
      %p195 = por %p193, %p194
      %p196 = scmp.ne.s32.totalorder %s182, %s183
      %p197 = scmp.eq.s32.totalorder %s23, 1
      %p198 = por %p196, %p197
      %p200 = scmp.ne.s32.totalorder %s183, %s199
      %p201 = scmp.eq.s32.totalorder %s23, 0
      %p202 = por %p200, %p201
      %p203 = scmp.le.s32.totalorder 1, %s17
      %p204 = scmp.lt.s32.totalorder %s17, 3
      %p205 = pnand %p203, %p204
      %p206 = pneg %p205
      // Predicated region
      $region9: #{tpu_custom_call.1} parent=5 // pred_check
        _
      $region10: #{tpu_custom_call.1} parent=5 // pred_check_branch
        %208 = sbr.rel (%p205) target = $region12
      $region11: #{tpu_custom_call.1} parent=5 // pred_region
        %s209 = ssub.s32 %s17, 1
        // Predicated region
        $region13: #{tpu_custom_call.1} parent=11 // pred_check
          %p210 = pneg %p64
        $region14: #{tpu_custom_call.1} parent=11 // pred_check_branch
          %212 = sbr.rel (%p210) target = $region16
        $region15: #{tpu_custom_call.1} parent=11 // pred_region
          _
        $region16: #{tpu_custom_call.1} parent=11 // pred_fallthru
          _
        // Predicated region
        $region17: #{tpu_custom_call.1} parent=11 // pred_check
          %p213 = pneg %p85
        $region18: #{tpu_custom_call.1} parent=11 // pred_check_branch
          %215 = sbr.rel (%p213) target = $region20
        $region19: #{tpu_custom_call.1} parent=11 // pred_region
          _
        $region20: #{tpu_custom_call.1} parent=11 // pred_fallthru
          _
        // Predicated region
        $region21: #{tpu_custom_call.1} parent=11 // pred_check
          %p216 = pneg %p106
        $region22: #{tpu_custom_call.1} parent=11 // pred_check_branch
          %218 = sbr.rel (%p216) target = $region24
        $region23: #{tpu_custom_call.1} parent=11 // pred_region
          _
        $region24: #{tpu_custom_call.1} parent=11 // pred_fallthru
          _
        // Predicated region
        $region25: #{tpu_custom_call.1} parent=11 // pred_check
          %p219 = pneg %p127
        $region26: #{tpu_custom_call.1} parent=11 // pred_check_branch
          %221 = sbr.rel (%p219) target = $region28
        $region27: #{tpu_custom_call.1} parent=11 // pred_region
          _
        $region28: #{tpu_custom_call.1} parent=11 // pred_fallthru
          _
        // Predicated region
        $region29: #{tpu_custom_call.1} parent=11 // pred_check
          %p222 = pneg %p148
        $region30: #{tpu_custom_call.1} parent=11 // pred_check_branch
          %224 = sbr.rel (%p222) target = $region32
        $region31: #{tpu_custom_call.1} parent=11 // pred_region
          _
        $region32: #{tpu_custom_call.1} parent=11 // pred_fallthru
          _
        // Predicated region
        $region33: #{tpu_custom_call.1} parent=11 // pred_check
          %p225 = pneg %p169
        $region34: #{tpu_custom_call.1} parent=11 // pred_check_branch
          %227 = sbr.rel (%p225) target = $region36
        $region35: #{tpu_custom_call.1} parent=11 // pred_region
          _
        $region36: #{tpu_custom_call.1} parent=11 // pred_fallthru
          _
      $region12: #{tpu_custom_call.1} parent=5 // pred_fallthru
        _
      %p228 = scmp.lt.s32.totalorder %s17, 2
      // Predicated region
      $region37: #{tpu_custom_call.1} parent=5 // pred_check
        %p229 = pneg %p228
      $region38: #{tpu_custom_call.1} parent=5 // pred_check_branch
        %231 = sbr.rel (%p229) target = $region40
      $region39: #{tpu_custom_call.1} parent=5 // pred_region
        // Predicated region
        $region41: #{tpu_custom_call.1} parent=39 // pred_check
          %p232 = pneg %p37
        $region42: #{tpu_custom_call.1} parent=39 // pred_check_branch
          %234 = sbr.rel (%p232) target = $region44
        $region43: #{tpu_custom_call.1} parent=39 // pred_region
          %s235 = smul.u32 32, %s17
          %s236 = ssub.s32 38, %s235
          %p237 = scmp.lt.s32.totalorder %s236, 32
          %s238 = scalar_select %p237, %s236, 32
          %s239 = smul.u32 128, %s238
          %p240 = scmp.lt.s32.totalorder %s235, 37
          %s241 = scalar_select %p240, %s235, 37
          %s242 = smul.addr %s241, 8
          %s243 = scalar_lea.vmem %s0, %s242
          %s244 = smul.u32 32, %s17
          %s245 = ssub.s32 38, %s244
          %p246 = scmp.lt.s32.totalorder %s245, 32
          %s247 = scalar_select %p246, %s245, 32
          %s248 = smul.u32 128, %s247
        $region44: #{tpu_custom_call.1} parent=39 // pred_fallthru
          _
      $region40: #{tpu_custom_call.1} parent=5 // pred_fallthru
        _
      %p249 = scmp.le.s32.totalorder 1, %s17
      %p250 = scmp.lt.s32.totalorder %s17, 3
      %p251 = pnand %p249, %p250
      %p252 = pneg %p251
      // Predicated region
      $region45: #{tpu_custom_call.1} parent=5 // pred_check
        _
      $region46: #{tpu_custom_call.1} parent=5 // pred_check_branch
        %254 = sbr.rel (%p251) target = $region48
      $region47: #{tpu_custom_call.1} parent=5 // pred_region
        %s255 = ssub.s32 %s17, 1
        %s256 = smul.u32 32, %s22
        %s257 = ssub.s32 38, %s256
        %p258 = scmp.lt.s32.totalorder %s257, 32
        %s259 = scalar_select %p258, %s257, 32
        %s260 = smul.u32 128, %s259
        %p261 = scmp.lt.s32.totalorder %s256, 37
        %s262 = scalar_select %p261, %s256, 37
        %s263 = smul.addr %s262, 8
        %s264 = scalar_lea.vmem %s0, %s263
        %p265 = pneg %p43
        %p266 = pneg %p40
        %p267 = pneg %p64
        %p268 = pneg %p61
        %p269 = pneg %p85
        %p270 = pneg %p82
        %p271 = pneg %p106
        %p272 = pneg %p103
        %p273 = pneg %p127
        %p274 = pneg %p124
        %p275 = pneg %p148
        %p276 = pneg %p145
        %p277 = pneg %p169
        %p278 = pneg %p166
        %p279 = pneg %p195
        %p280 = pneg %p192
        %s281 = sand.u32 %s182, 1
        %s282 = scalar_lea.sflag [#allocation4], %s281
        %s283 = sand.u32 %s182, 1
        %s284 = smul.addr %s283, 2
        %s285 = scalar_lea.vmem [#allocation3], %s284
        %s286 = smul.u32 32, %s22
        %s287 = ssub.s32 38, %s286
        %p288 = scmp.lt.s32.totalorder %s287, 32
        %s289 = scalar_select %p288, %s287, 32
        %s290 = smul.u32 128, %s289
        %p291 = scmp.lt.s32.totalorder %s286, 37
        %s292 = scalar_select %p291, %s286, 37
        %s293 = smul.addr %s292, 8
        %s294 = scalar_lea.vmem %s0, %s293
        %s295 = smul.u32 32, %s22
        %s296 = ssub.s32 38, %s295
        %p297 = scmp.lt.s32.totalorder %s296, 32
        %s298 = scalar_select %p297, %s296, 32
        %s299 = smul.u32 128, %s298
        %s300 = smul.u32 2, %s22
        %s301 = ssub.s32 3, %s300
        %p302 = scmp.lt.s32.totalorder %s301, 2
        %s303 = scalar_select %p302, %s301, 2
        %s304 = smul.u32 16, %s303
        %v306 = vld [vmem:[%s294] sm:$0xff]
        %v307 = vld [vmem:[%s294 + $0x8] sm:$0xff]
        %v308 = vld [vmem:[%s294 + $0x10] sm:$0xff]
        %v309 = vld [vmem:[%s294 + $0x18] sm:$0xff]
        %v310 = vld [vmem:[%s294 + $0x20] sm:$0xff]
        %v311 = vld [vmem:[%s294 + $0x28] sm:$0xff]
        %v312 = vld [vmem:[%s294 + $0x30] sm:$0xff]
        %v313 = vld [vmem:[%s294 + $0x38] sm:$0xff]
        %v314 = vld [vmem:[%s294 + $0x40] sm:$0xff]
        %v315 = vld [vmem:[%s294 + $0x48] sm:$0xff]
        %v316 = vld [vmem:[%s294 + $0x50] sm:$0xff]
        %v317 = vld [vmem:[%s294 + $0x58] sm:$0xff]
        %v318 = vld [vmem:[%s294 + $0x60] sm:$0xff]
        %v319 = vld [vmem:[%s294 + $0x68] sm:$0xff]
        %v320 = vld [vmem:[%s294 + $0x70] sm:$0xff]
        %v321 = vld [vmem:[%s294 + $0x78] sm:$0xff]
        %v322 = vld [vmem:[%s294 + $0x80] sm:$0xff]
        %v323 = vld [vmem:[%s294 + $0x88] sm:$0xff]
        %v324 = vld [vmem:[%s294 + $0x90] sm:$0xff]
        %v325 = vld [vmem:[%s294 + $0x98] sm:$0xff]
        %v326 = vld [vmem:[%s294 + $0xa0] sm:$0xff]
        %v327 = vld [vmem:[%s294 + $0xa8] sm:$0xff]
        %v328 = vld [vmem:[%s294 + $0xb0] sm:$0xff]
        %v329 = vld [vmem:[%s294 + $0xb8] sm:$0xff]
        %v330 = vld [vmem:[%s294 + $0xc0] sm:$0xff]
        %v331 = vld [vmem:[%s294 + $0xc8] sm:$0xff]
        %v332 = vld [vmem:[%s294 + $0xd0] sm:$0xff]
        %v333 = vld [vmem:[%s294 + $0xd8] sm:$0xff]
        %v334 = vld [vmem:[%s294 + $0xe0] sm:$0xff]
        %v335 = vld [vmem:[%s294 + $0xe8] sm:$0xff]
        %v336 = vld [vmem:[%s294 + $0xf0] sm:$0xff]
        %v337 = vld [vmem:[%s294 + $0xf8] sm:$0xff]
        %v338 = vpack.c.bf16 %v307, %v306
        %v339 = vpack.c.bf16 %v309, %v308
        %v340 = vpack.c.bf16 %v311, %v310
        %v341 = vpack.c.bf16 %v313, %v312
        %v342 = vpack.c.bf16 %v315, %v314
        %v343 = vpack.c.bf16 %v317, %v316
        %v344 = vpack.c.bf16 %v319, %v318
        %v345 = vpack.c.bf16 %v321, %v320
        %v346 = vpack.c.bf16 %v323, %v322
        %v347 = vpack.c.bf16 %v325, %v324
        %v348 = vpack.c.bf16 %v327, %v326
        %v349 = vpack.c.bf16 %v329, %v328
        %v350 = vpack.c.bf16 %v331, %v330
        %v351 = vpack.c.bf16 %v333, %v332
        %v352 = vpack.c.bf16 %v335, %v334
        %v353 = vpack.c.bf16 %v337, %v336
        %v354 = vld [vmem:[%s1] sm:$0xf]
        %v355 = vld [vmem:[%s1 + $0x4] sm:$0xf]
        %v356 = vld [vmem:[%s1 + $0x8] sm:$0xf]
        %v357 = vld [vmem:[%s1 + $0xc] sm:$0xf]
        %v358 = vld [vmem:[%s2] sm:$0xff]
        %v359 = vld [vmem:[%s2 + $0x8] sm:$0xff]
        %v360 = vld [vmem:[%s2 + $0x10] sm:$0xff]
        %v361 = vld [vmem:[%s2 + $0x18] sm:$0xff]
        %363 = vset.pattern.permute.xlu0 0
        %364 = vperm.xlu0 %363, %v358
        %v365 = vpop.permute.xlu0 %364
        %368 = vset.pattern.permute.xlu0 0
        %369 = vperm.xlu0 %368, %v359
        %v370 = vpop.permute.xlu0 %369
        %373 = vset.pattern.permute.xlu0 0
        %374 = vperm.xlu0 %373, %v360
        %v375 = vpop.permute.xlu0 %374
        %378 = vset.pattern.permute.xlu0 0
        %379 = vperm.xlu0 %378, %v361
        %v380 = vpop.permute.xlu0 %379
        %v386 = vunpack.c.l.b16 %v354
        %v387 = vunpack.c.l.b16 %v355
        %v388 = vunpack.c.l.b16 %v356
        %v389 = vunpack.c.l.b16 %v357
        %v390 = vpack.c.b16 %v387, %v386
        %v391 = vpack.c.b16 %v389, %v388
        %vm392 = vcmask 64512
        %v394 = vsel %vm392, %v390, 0
        %v397 = vsel %vm392, %v391, 0
        %v400 = vsel %vm392, %v338, 0
        %v403 = vsel %vm392, %v339, 0
        %v406 = vsel %vm392, %v340, 0
        %v409 = vsel %vm392, %v341, 0
        %v412 = vsel %vm392, %v342, 0
        %v415 = vsel %vm392, %v343, 0
        %v418 = vsel %vm392, %v344, 0
        %v421 = vsel %vm392, %v345, 0
        %v424 = vsel %vm392, %v346, 0
        %v427 = vsel %vm392, %v347, 0
        %v430 = vsel %vm392, %v348, 0
        %v433 = vsel %vm392, %v349, 0
        %v436 = vsel %vm392, %v350, 0
        %v439 = vsel %vm392, %v351, 0
        %v442 = vsel %vm392, %v352, 0
        %v445 = vsel %vm392, %v353, 0
        %447 = vmatprep.subr.bf16.mxu0 0
        %448 = vmatpush1.bf16.xpose.msra.mxu0 %v421
        %449 = vmatprep.subr.bf16.mxu0 0
        %450 = vmatpush1.bf16.xpose.msra.mxu0 %v418
        %451 = vmatprep.subr.bf16.mxu0 0
        %452 = vmatpush1.bf16.xpose.msra.mxu0 %v415
        %453 = vmatprep.subr.bf16.mxu0 0
        %454 = vmatpush1.bf16.xpose.msra.mxu0 %v412
        %455 = vmatprep.subr.bf16.mxu0 0
        %456 = vmatpush1.bf16.xpose.msra.mxu0 %v409
        %457 = vmatprep.subr.bf16.mxu0 0
        %458 = vmatpush1.bf16.xpose.msra.mxu0 %v406
        %459 = vmatprep.subr.bf16.mxu0 0
        %460 = vmatpush1.bf16.xpose.msra.mxu0 %v403
        %461 = vmatprep.subr.bf16.mxu0 0
        %462 = vmatpush1.bf16.xpose.msra.mxu0 %v400
        %463 = vmatprep.subr.bf16.mxu0 0
        %464 = vmatpush2.bf16.xpose.msra.mxu0 %v445
        %465 = vmatprep.subr.bf16.mxu0 0
        %466 = vmatpush2.bf16.xpose.msra.mxu0 %v442
        %467 = vmatprep.subr.bf16.mxu0 0
        %468 = vmatpush2.bf16.xpose.msra.mxu0 %v439
        %469 = vmatprep.subr.bf16.mxu0 0
        %470 = vmatpush2.bf16.xpose.msra.mxu0 %v436
        %471 = vmatprep.subr.bf16.mxu0 0
        %472 = vmatpush2.bf16.xpose.msra.mxu0 %v433
        %473 = vmatprep.subr.bf16.mxu0 0
        %474 = vmatpush2.bf16.xpose.msra.mxu0 %v430
        %475 = vmatprep.subr.bf16.mxu0 0
        %476 = vmatpush2.bf16.xpose.msra.mxu0 %v427
        %477 = vmatprep.subr.bf16.mxu0 0
        %478 = vmatpush2.bf16.xpose.msra.mxu0 %v424
        %479 = vmatprep.mubr.bf16.mxu0 0
        %480 = vmatmul.mubr.bf16.gmra.mxu0 %v394
        %v481 = vpop.f32.mrf.mxu0
        %v482 = vadd.f32 %v365, %v481
        %v483 = vpop.f32.mrf.mxu0
        %v484 = vadd.f32 %v365, %v483
        %v485 = vpop.f32.mrf.mxu0
        %v486 = vadd.f32 %v370, %v485
        %v487 = vpop.f32.mrf.mxu0
        %v488 = vadd.f32 %v370, %v487
        %489 = vmatprep.mubr.bf16.mxu0 0
        %490 = vmatmul.mubr.bf16.gmra.mxu0 %v397
        %v491 = vpop.f32.mrf.mxu0
        %v492 = vadd.f32 %v375, %v491
        %v493 = vpop.f32.mrf.mxu0
        %v494 = vadd.f32 %v375, %v493
        %v495 = vpop.f32.mrf.mxu0
        %v496 = vadd.f32 %v380, %v495
        %v497 = vpop.f32.mrf.mxu0
        %v498 = vadd.f32 %v380, %v497
        %499 = vdwg.mxu0
        %v500 = vmax.f32 %v482, 0.0
        %v501 = vmax.f32 %v484, 0.0
        %v502 = vmax.f32 %v486, 0.0
        %v503 = vmax.f32 %v488, 0.0
        %v504 = vmax.f32 %v492, 0.0
        %v505 = vmax.f32 %v494, 0.0
        %v506 = vmax.f32 %v496, 0.0
        %v507 = vmax.f32 %v498, 0.0
        %v508 = vld [vmem:[%s3] sm:$0xf]
        %v509 = vld [vmem:[%s3 + $0x4] sm:$0xf]
        %v510 = vld [vmem:[%s3 + $0x8] sm:$0xf]
        %v511 = vld [vmem:[%s3 + $0xc] sm:$0xf]
        %v512 = vld [vmem:[%s4] sm:$0xff]
        %v513 = vld [vmem:[%s4 + $0x8] sm:$0xff]
        %v514 = vld [vmem:[%s4 + $0x10] sm:$0xff]
        %v515 = vld [vmem:[%s4 + $0x18] sm:$0xff]
        %v516 = vpack.c.bf16 %v502, %v500
        %v517 = vpack.c.bf16 %v503, %v501
        %v518 = vpack.c.bf16 %v506, %v504
        %v519 = vpack.c.bf16 %v507, %v505
        %521 = vset.pattern.permute.xlu0 0
        %522 = vperm.xlu0 %521, %v512
        %v523 = vpop.permute.xlu0 %522
        %526 = vset.pattern.permute.xlu0 0
        %527 = vperm.xlu0 %526, %v513
        %v528 = vpop.permute.xlu0 %527
        %531 = vset.pattern.permute.xlu0 0
        %532 = vperm.xlu0 %531, %v514
        %v533 = vpop.permute.xlu0 %532
        %536 = vset.pattern.permute.xlu0 0
        %537 = vperm.xlu0 %536, %v515
        %v538 = vpop.permute.xlu0 %537
        %v544 = vunpack.c.l.b16 %v508
        %v545 = vunpack.c.l.b16 %v509
        %v546 = vunpack.c.l.b16 %v510
        %v547 = vunpack.c.l.b16 %v511
        %v548 = vpack.c.b16 %v545, %v544
        %v549 = vpack.c.b16 %v547, %v546
        %vm550 = vcmask 261120
        %v552 = vsel %vm550, %v548, 0
        %v555 = vsel %vm550, %v549, 0
        %557 = vmatprep.subr.bf16.mxu0 0
        %558 = vmatpush1.bf16.msra.mxu0 0
        %559 = vmatprep.subr.bf16.mxu0 0
        %560 = vmatpush1.bf16.msra.mxu0 0
        %561 = vmatprep.subr.bf16.mxu0 0
        %562 = vmatpush1.bf16.msra.mxu0 0
        %563 = vmatprep.subr.bf16.mxu0 0
        %564 = vmatpush1.bf16.msra.mxu0 0
        %565 = vmatprep.subr.bf16.mxu0 0
        %566 = vmatpush1.bf16.msra.mxu0 0
        %567 = vmatprep.subr.bf16.mxu0 0
        %568 = vmatpush1.bf16.msra.mxu0 0
        %569 = vmatprep.subr.bf16.mxu0 %v519
        %570 = vmatpush1.bf16.msra.mxu0 %v518
        %571 = vmatprep.subr.bf16.mxu0 %v517
        %572 = vmatpush1.bf16.msra.mxu0 %v516
        %573 = vmatprep.subr.bf16.mxu0 0
        %574 = vmatpush2.bf16.msra.mxu0 0
        %575 = vmatprep.subr.bf16.mxu0 0
        %576 = vmatpush2.bf16.msra.mxu0 0
        %577 = vmatprep.subr.bf16.mxu0 0
        %578 = vmatpush2.bf16.msra.mxu0 0
        %579 = vmatprep.subr.bf16.mxu0 0
        %580 = vmatpush2.bf16.msra.mxu0 0
        %581 = vmatprep.subr.bf16.mxu0 0
        %582 = vmatpush2.bf16.msra.mxu0 0
        %583 = vmatprep.subr.bf16.mxu0 0
        %584 = vmatpush2.bf16.msra.mxu0 0
        %585 = vmatprep.subr.bf16.mxu0 0
        %586 = vmatpush2.bf16.msra.mxu0 0
        %587 = vmatprep.subr.bf16.mxu0 0
        %588 = vmatpush2.bf16.msra.mxu0 0
        %589 = vmatprep.mubr.bf16.mxu0 0
        %590 = vmatmul.mubr.bf16.gmra.mxu0 %v552
        %v591 = vpop.f32.mrf.mxu0
        %v592 = vadd.f32 %v523, %v591
        %v593 = vpop.f32.mrf.mxu0
        %v594 = vadd.f32 %v523, %v593
        %v595 = vpop.f32.mrf.mxu0
        %v596 = vadd.f32 %v528, %v595
        %v597 = vpop.f32.mrf.mxu0
        %v598 = vadd.f32 %v528, %v597
        %599 = vmatprep.mubr.bf16.mxu0 0
        %600 = vmatmul.mubr.bf16.gmra.mxu0 %v555
        %v601 = vpop.f32.mrf.mxu0
        %v602 = vadd.f32 %v533, %v601
        %v603 = vpop.f32.mrf.mxu0
        %v604 = vadd.f32 %v533, %v603
        %v605 = vpop.f32.mrf.mxu0
        %v606 = vadd.f32 %v538, %v605
        %v607 = vpop.f32.mrf.mxu0
        %v608 = vadd.f32 %v538, %v607
        %609 = vdwg.mxu0
        %v610 = vmax.f32 %v592, 0.0
        %v611 = vmax.f32 %v594, 0.0
        %v612 = vmax.f32 %v596, 0.0
        %v613 = vmax.f32 %v598, 0.0
        %v614 = vmax.f32 %v602, 0.0
        %v615 = vmax.f32 %v604, 0.0
        %v616 = vmax.f32 %v606, 0.0
        %v617 = vmax.f32 %v608, 0.0
        %s618 = scalar_lea.vmem %s3, 16
        %v619 = vld [vmem:[%s618] sm:$0xf]
        %v620 = vld [vmem:[%s618 + $0x4] sm:$0xf]
        %v621 = vld [vmem:[%s618 + $0x8] sm:$0xf]
        %v622 = vld [vmem:[%s618 + $0xc] sm:$0xf]
        %s623 = scalar_lea.vmem %s4, 32
        %v624 = vld [vmem:[%s623] sm:$0xff]
        %v625 = vld [vmem:[%s623 + $0x8] sm:$0xff]
        %v626 = vld [vmem:[%s623 + $0x10] sm:$0xff]
        %v627 = vld [vmem:[%s623 + $0x18] sm:$0xff]
        %v628 = vpack.c.bf16 %v612, %v610
        %v629 = vpack.c.bf16 %v613, %v611
        %v630 = vpack.c.bf16 %v616, %v614
        %v631 = vpack.c.bf16 %v617, %v615
        %633 = vset.pattern.permute.xlu0 0
        %634 = vperm.xlu0 %633, %v624
        %v635 = vpop.permute.xlu0 %634
        %638 = vset.pattern.permute.xlu0 0
        %639 = vperm.xlu0 %638, %v625
        %v640 = vpop.permute.xlu0 %639
        %643 = vset.pattern.permute.xlu0 0
        %644 = vperm.xlu0 %643, %v626
        %v645 = vpop.permute.xlu0 %644
        %648 = vset.pattern.permute.xlu0 0
        %649 = vperm.xlu0 %648, %v627
        %v650 = vpop.permute.xlu0 %649
        %v656 = vunpack.c.l.b16 %v619
        %v657 = vunpack.c.l.b16 %v620
        %v658 = vunpack.c.l.b16 %v621
        %v659 = vunpack.c.l.b16 %v622
        %v660 = vpack.c.b16 %v657, %v656
        %v661 = vpack.c.b16 %v659, %v658
        %v663 = vsel %vm550, %v660, 0
        %v666 = vsel %vm550, %v661, 0
        %668 = vmatprep.subr.bf16.mxu0 0
        %669 = vmatpush1.bf16.msra.mxu0 0
        %670 = vmatprep.subr.bf16.mxu0 0
        %671 = vmatpush1.bf16.msra.mxu0 0
        %672 = vmatprep.subr.bf16.mxu0 0
        %673 = vmatpush1.bf16.msra.mxu0 0
        %674 = vmatprep.subr.bf16.mxu0 0
        %675 = vmatpush1.bf16.msra.mxu0 0
        %676 = vmatprep.subr.bf16.mxu0 0
        %677 = vmatpush1.bf16.msra.mxu0 0
        %678 = vmatprep.subr.bf16.mxu0 0
        %679 = vmatpush1.bf16.msra.mxu0 0
        %680 = vmatprep.subr.bf16.mxu0 %v631
        %681 = vmatpush1.bf16.msra.mxu0 %v630
        %682 = vmatprep.subr.bf16.mxu0 %v629
        %683 = vmatpush1.bf16.msra.mxu0 %v628
        %684 = vmatprep.subr.bf16.mxu0 0
        %685 = vmatpush2.bf16.msra.mxu0 0
        %686 = vmatprep.subr.bf16.mxu0 0
        %687 = vmatpush2.bf16.msra.mxu0 0
        %688 = vmatprep.subr.bf16.mxu0 0
        %689 = vmatpush2.bf16.msra.mxu0 0
        %690 = vmatprep.subr.bf16.mxu0 0
        %691 = vmatpush2.bf16.msra.mxu0 0
        %692 = vmatprep.subr.bf16.mxu0 0
        %693 = vmatpush2.bf16.msra.mxu0 0
        %694 = vmatprep.subr.bf16.mxu0 0
        %695 = vmatpush2.bf16.msra.mxu0 0
        %696 = vmatprep.subr.bf16.mxu0 0
        %697 = vmatpush2.bf16.msra.mxu0 0
        %698 = vmatprep.subr.bf16.mxu0 0
        %699 = vmatpush2.bf16.msra.mxu0 0
        %700 = vmatprep.mubr.bf16.mxu0 0
        %701 = vmatmul.mubr.bf16.gmra.mxu0 %v663
        %v702 = vpop.f32.mrf.mxu0
        %v703 = vadd.f32 %v635, %v702
        %v704 = vpop.f32.mrf.mxu0
        %v705 = vadd.f32 %v635, %v704
        %v706 = vpop.f32.mrf.mxu0
        %v707 = vadd.f32 %v640, %v706
        %v708 = vpop.f32.mrf.mxu0
        %v709 = vadd.f32 %v640, %v708
        %710 = vmatprep.mubr.bf16.mxu0 0
        %711 = vmatmul.mubr.bf16.gmra.mxu0 %v666
        %v712 = vpop.f32.mrf.mxu0
        %v713 = vadd.f32 %v645, %v712
        %v714 = vpop.f32.mrf.mxu0
        %v715 = vadd.f32 %v645, %v714
        %v716 = vpop.f32.mrf.mxu0
        %v717 = vadd.f32 %v650, %v716
        %v718 = vpop.f32.mrf.mxu0
        %v719 = vadd.f32 %v650, %v718
        %720 = vdwg.mxu0
        %v721 = vmax.f32 %v703, 0.0
        %v722 = vmax.f32 %v705, 0.0
        %v723 = vmax.f32 %v707, 0.0
        %v724 = vmax.f32 %v709, 0.0
        %v725 = vmax.f32 %v713, 0.0
        %v726 = vmax.f32 %v715, 0.0
        %v727 = vmax.f32 %v717, 0.0
        %v728 = vmax.f32 %v719, 0.0
        %v729 = vld [vmem:[%s5] sm:$0xff]
        %v730 = vld [vmem:[%s5 + $0x8] sm:$0xff]
        %v731 = vld [vmem:[%s5 + $0x10] sm:$0xff]
        %v732 = vld [vmem:[%s5 + $0x18] sm:$0xff]
        %734 = vset.pattern.permute.xlu0 0
        %735 = vperm.xlu0 %734, %v729
        %v736 = vpop.permute.xlu0 %735
        %739 = vset.pattern.permute.xlu0 0
        %740 = vperm.xlu0 %739, %v730
        %v741 = vpop.permute.xlu0 %740
        %744 = vset.pattern.permute.xlu0 0
        %745 = vperm.xlu0 %744, %v731
        %v746 = vpop.permute.xlu0 %745
        %749 = vset.pattern.permute.xlu0 0
        %750 = vperm.xlu0 %749, %v732
        %v751 = vpop.permute.xlu0 %750
        %v753 = vmul.f32 %v721, %v736
        %v754 = vmul.f32 %v722, %v736
        %v755 = vmul.f32 %v723, %v741
        %v756 = vmul.f32 %v724, %v741
        %v757 = vmul.f32 %v725, %v746
        %v758 = vmul.f32 %v726, %v746
        %v759 = vmul.f32 %v727, %v751
        %v760 = vmul.f32 %v728, %v751
        %v761 = vadd.f32 %v753, %v755
        %v762 = vadd.f32 %v761, %v757
        %v763 = vadd.f32 %v762, %v759
        %v764 = vrot.slane %v763, 4
        %v765 = vadd.f32 %v763, %v764
        %v766 = vrot.slane %v765, 2
        %v767 = vadd.f32 %v765, %v766
        %v768 = vrot.slane %v767, 1
        %v769 = vadd.f32 %v767, %v768
        %v770 = vadd.f32 %v754, %v756
        %v771 = vadd.f32 %v770, %v758
        %v772 = vadd.f32 %v771, %v760
        %v773 = vrot.slane %v772, 4
        %v774 = vadd.f32 %v772, %v773
        %v775 = vrot.slane %v774, 2
        %v776 = vadd.f32 %v774, %v775
        %v777 = vrot.slane %v776, 1
        %v778 = vadd.f32 %v776, %v777
        %s779 = sld [smem:[#allocation2]]
        %v780 = vstv %s779
        %v781 = vadd.f32 %v769, %v780
        %v782 = vadd.f32 %v778, %v780
        %v785 = vcombine.low %v781, %v782
        %v787 = vunpack.c.l.s4 1966171168
        %v788 = vunpack.c.0.s8 %v787
        %v789 = vlaneseq
        %v790 = vshrl.u32 %v789, 7
        %v791 = vsub.s32 %v788, %v790
        %v792 = vrot.slane %v785, %v791
        %v794 = vunpack.c.l.s4 1966171168
        %v795 = vunpack.c.0.s8 %v794
        %v796 = vlaneseq
        %v797 = vshrl.u32 %v796, 7
        %v798 = vsub.s32 %v795, %v797
        %v799 = vrot.slane %v792, %v798
        %v801 = vlaneseq
        %vm802 = vcmp.ge.s32.totalorder %v801, 0
        %vm803 = vcmp.lt.s32.totalorder %v801, 256
        %vm804 = vmand %vm802, %vm803
        %805 = vst.msk [vmem:[%s285] sm:$0x3] %vm804, %v799
        %s806 = sand.u32 %s182, 1
        %s807 = scalar_lea.sflag [#allocation4], %s806
        %s808 = sand.u32 %s182, 1
        %s809 = smul.addr %s808, 2
        %s810 = scalar_lea.vmem [#allocation3], %s809
        // Predicated region
        $region49: #{tpu_custom_call.1} parent=47 // pred_check
          %p811 = pneg %p192
        $region50: #{tpu_custom_call.1} parent=47 // pred_check_branch
          %813 = sbr.rel (%p811) target = $region52
        $region51: #{tpu_custom_call.1} parent=47 // pred_region
          %s814 = smul.u32 2, %s22
          %s815 = ssub.s32 3, %s814
          %p816 = scmp.lt.s32.totalorder %s815, 2
          %s817 = scalar_select %p816, %s815, 2
          %s818 = smul.u32 16, %s817
          %s820 = ssub.s32 32, %s818
          %821 = vsyncadd %s807, %s820
          %p822 = scmp.ne.s32.totalorder 0, %s818
          %s823 = smul.addr %s814, 16
          %s824 = scalar_lea.hbm %s7, %s823
          %s825 = sshll.u32 %s817, 4
          %s826 = sshll.u32 %s810, 4
          %s827 = int_to_ptr.vmem [resolvable:$true] %s826
          %829 = dma.vmem_to_hbm [thread:$0]  (%p822), %s827, %s825, %s824, %s807
        $region52: #{tpu_custom_call.1} parent=47 // pred_fallthru
          _
      $region48: #{tpu_custom_call.1} parent=5 // pred_fallthru
        _
      %p830 = scmp.le.s32.totalorder 2, %s17
      // Predicated region
      $region53: #{tpu_custom_call.1} parent=5 // pred_check
        %p831 = pneg %p830
      $region54: #{tpu_custom_call.1} parent=5 // pred_check_branch
        %833 = sbr.rel (%p831) target = $region56
      $region55: #{tpu_custom_call.1} parent=5 // pred_region
        %s834 = ssub.s32 %s17, 2
        // Predicated region
        $region57: #{tpu_custom_call.1} parent=55 // pred_check
          %p835 = pneg %p198
        $region58: #{tpu_custom_call.1} parent=55 // pred_check_branch
          %837 = sbr.rel (%p835) target = $region60
        $region59: #{tpu_custom_call.1} parent=55 // pred_region
          %s838 = sand.u32 %s183, 1
          %s839 = scalar_lea.sflag [#allocation4], %s838
          %s840 = sand.u32 %s183, 1
          %s841 = smul.addr %s840, 2
          %s842 = scalar_lea.vmem [#allocation3], %s841
          %843 = dma.done %s839, 32
        $region60: #{tpu_custom_call.1} parent=55 // pred_fallthru
          _
      $region56: #{tpu_custom_call.1} parent=5 // pred_fallthru
        _
    $region6: #{tpu_custom_call.1} parent=1 // loop_footer
      %s21 = sadd.s32 1, %s17
    $region7: #{tpu_custom_call.1} parent=1 // loop_footer_branch
      %16 = sbr.rel target = $region3
    $region8: #{tpu_custom_call.1} parent=1 // loop_exit
      _
    %844 = vsyncpa [#allocation4], 1
    %s845 = scalar_lea.sflag [#allocation4], 1
    %846 = vsyncpa %s845, 1

</llo_original>
